<compile_context>
chip_gen: v7x
topology: tpu7x:2x2x1
jax: 0.10.0
libtpu: 0.0.40
codegen_flags: <defaults>
</compile_context>

<pallas_src>
import jax
import jax.numpy as jnp
from jax import lax
from jax.experimental import pallas as pl
from jax.experimental.pallas import tpu as pltpu


def _round_up(n, m):
    return ((n + m - 1) // m) * m


def _cdiv(a, b):
    return (a + b - 1) // b


# ---------------------------------------------------------------------------
# Kernel: one (region, co-tile, batch-tile) grid step contracts the input
# channels against the per-mode complex weights on the VPU.
#   a_ref: (1, TB, 2*Ci, XYp)   rows [0:Ci]=Re(x_ft), rows [Ci:2Ci]=Im(x_ft)
#   w_ref: (1, 2*Ci, TCO, XYp)  rows [0:Ci]=Re(w),    rows [Ci:2Ci]=Im(w)
#   o_ref: (1, 2, TB, TCO, XYp) axis 1: 0=Re(out), 1=Im(out)
# ---------------------------------------------------------------------------
def _spectral_mix_kernel(a_ref, w_ref, o_ref):
    _, tb, two_ci, xyp = a_ref.shape
    ci = two_ci // 2
    tco = w_ref.shape[2]

    for b in range(tb):                          # TB <= 8, static loop
        def accum(i, carry):
            acc_r, acc_i = carry
            # (1, XYp) activation rows; broadcast over the TCO sublanes in the
            # multiply.  (A stride-0 sublane-broadcast load —
            # pl.ds(i, tco, stride=0) — would move the broadcast onto the spare
            # vld slots; kept as the plain form for toolchain portability.)
            ar = a_ref[0, b, pl.ds(i, 1), :]
            ai = a_ref[0, b, pl.ds(ci + i, 1), :]
            wr = w_ref[0, i].astype(jnp.float32)          # (TCO, XYp)
            wi = w_ref[0, ci + i].astype(jnp.float32)
            # plain 4-mul complex product with f32 accumulation
            return (acc_r + (wr * ar - wi * ai),
                    acc_i + (wr * ai + wi * ar))

        zeros = jnp.zeros((tco, xyp), jnp.float32)
        if ci <= 16:
            acc_r, acc_i = zeros, zeros
            for i in range(ci):                  # small Ci: static unroll
                acc_r, acc_i = accum(i, (acc_r, acc_i))
        else:                                    # large Ci: bounded live ranges
            acc_r, acc_i = lax.fori_loop(0, ci, accum, (zeros, zeros), unroll=4)

        # Direct lane-dense slice stores (no concatenate temp).
        o_ref[0, 0, b] = acc_r.astype(o_ref.dtype)
        o_ref[0, 1, b] = acc_i.astype(o_ref.dtype)


def _spectral_mix_call(a, w, *, ci, cop, tco, tb):
    """a: (2, Bp, 2*Ci, XYp) f32; w: (2, 2*Ci, Cop, XYp).
       returns (2, 2, Bp, Cop, XYp) f32 (axis 1: real, imag)."""
    R, bp, two_ci, xyp = a.shape
    nb = bp // tb
    nco = cop // tco
    flops = R * bp * ci * cop * xyp * 8
    bytes_accessed = int(a.size * a.dtype.itemsize + w.size * w.dtype.itemsize
                         + R * 2 * bp * cop * xyp * 4)

    def run(single_buffer_weights):
        w_kwargs = {}
        w_bufs = 2
        if single_buffer_weights:
            # Weight block index is constant along the inner batch axis, so a
            # second buffer buys no overlap — single-buffer it (VMEM win, v7x).
            w_kwargs = dict(pipeline_mode=pl.Buffered(1))
            w_bufs = 1
        vmem_needed = (w_bufs * two_ci * tco * xyp * w.dtype.itemsize
                       + 2 * tb * two_ci * xyp * 4          # a block, 2 buffers
                       + 2 * 2 * tb * tco * xyp * 4)         # out block, 2 buffers
        vmem_limit = int(min(max(2 * vmem_needed + (4 << 20), 32 << 20), 64 << 20))

        return pl.pallas_call(
            _spectral_mix_kernel,
            out_shape=jax.ShapeDtypeStruct((R, 2, bp, cop, xyp), jnp.float32),
            grid=(R, nco, nb),
            in_specs=[
                pl.BlockSpec((1, tb, two_ci, xyp), lambda r, c, b: (r, b, 0, 0)),
                pl.BlockSpec((1, two_ci, tco, xyp), lambda r, c, b: (r, 0, c, 0),
                             **w_kwargs),
            ],
            out_specs=pl.BlockSpec((1, 2, tb, tco, xyp),
                                   lambda r, c, b: (r, 0, b, c, 0)),
            compiler_params=pltpu.CompilerParams(
                dimension_semantics=("parallel", "parallel", "parallel"),
                vmem_limit_bytes=vmem_limit),
            cost_estimate=pl.CostEstimate(flops=flops, transcendentals=0,
                                          bytes_accessed=bytes_accessed),
        )(a, w)

    try:
        return run(True)
    except Exception:
        # pipeline_mode=pl.Buffered(1) unsupported on this toolchain — use the
        # default double-buffered pipeline instead.
        return run(False)


class SpectralConv2dPallas:
    # Keep acc_r + acc_i (f32) within ~32 vregs (128 KiB): TCO * XYp <= 16384.
    _ACC_BUDGET_ELEMS = 16 * 1024

    def __init__(self, in_channels, out_channels, modes1, modes2, key,
                 weight_store_dtype=jnp.float32):
        self.in_channels = in_channels
        self.out_channels = out_channels
        self.modes1 = modes1
        self.modes2 = modes2
        scale = 1.0 / (in_channels * out_channels)
        k1, k2, k3, k4 = jax.random.split(key, 4)
        shape = (in_channels, out_channels, modes1, modes2)
        # torch.rand(..., dtype=cfloat): real & imag each uniform in [0, 1)
        self.weights1 = (scale * (jax.random.uniform(k1, shape, jnp.float32)
                                  + 1j * jax.random.uniform(k2, shape, jnp.float32))
                         ).astype(jnp.complex64)
        self.weights2 = (scale * (jax.random.uniform(k3, shape, jnp.float32)
                                  + 1j * jax.random.uniform(k4, shape, jnp.float32))
                         ).astype(jnp.complex64)

        xy = modes1 * modes2
        self._xy = xy
        self._xyp = _round_up(xy, 128)          # lane-dense flattened mode axis

        # Output-channel tile: full Co when the accumulators fit in the vreg
        # budget; otherwise a multiple-of-8 tile (satisfies the (8,128) rule).
        if out_channels * self._xyp <= self._ACC_BUDGET_ELEMS:
            self._tco = out_channels
            self._cop = out_channels
        else:
            self._tco = max(8, min(16, (self._ACC_BUDGET_ELEMS // self._xyp) // 8 * 8))
            self._cop = _round_up(out_channels, self._tco)

        # Hoist all weight-side glue out of the forward path: stack the two mode
        # regions, keep plain (wr, wi) planes (no Karatsuba plane), flatten the
        # modes into the lane axis, pad Co and XY.
        w = jnp.stack([self.weights1, self.weights2], axis=0)     # (2, Ci, Co, m1, m2)
        wr = jnp.real(w).reshape(2, in_channels, out_channels, xy)
        wi = jnp.imag(w).reshape(2, in_channels, out_channels, xy)
        planes = jnp.concatenate([wr, wi], axis=1)                # (2, 2*Ci, Co, xy)
        planes = jnp.pad(planes, ((0, 0), (0, 0),
                                  (0, self._cop - out_channels),
                                  (0, self._xyp - xy)))
        # bf16 storage halves the dominant weight DMA on v6e/v7x; default f32
        # keeps the exact cfloat semantics of the PyTorch module.
        self._w_packed = planes.astype(weight_store_dtype)        # (2, 2*Ci, Cop, XYp)

    def __call__(self, x):
        # x: (B, C_in, H, W) float32  (NCHW, same as PyTorch)
        B, C, H, W = x.shape
        assert C == self.in_channels
        m1, m2 = self.modes1, self.modes2
        ci, co = self.in_channels, self.out_channels
        Wf = W // 2 + 1
        assert m1 <= H and m2 <= Wf, "modes exceed the available spectrum"

        # TODO(synk): rfft2/irfft2 have no clean Pallas equivalent; done via XLA FFT.
        x_ft = jnp.fft.rfft2(x)                                   # (B, Ci, H, Wf) c64

        # Gather the two mode regions and pack (re, im) along the channel axis
        # with a single concatenate + reshape + pad (lane pad + batch pad).
        a_c = jnp.stack([x_ft[:, :, :m1, :m2],
                         x_ft[:, :, H - m1:, :m2]], axis=0)       # (2, B, Ci, m1, m2)
        a = jnp.concatenate([jnp.real(a_c), jnp.imag(a_c)], axis=2)
        a = a.reshape(2, B, 2 * ci, self._xy).astype(jnp.float32)

        tb = min(B, 8)                          # batch rows per block
        bp = _cdiv(B, tb) * tb
        pad_b = bp - B
        pad_xy = self._xyp - self._xy
        if pad_b or pad_xy:
            a = jnp.pad(a, ((0, 0), (0, pad_b), (0, 0), (0, pad_xy)))

        out = _spectral_mix_call(a, self._w_packed, ci=ci, cop=self._cop,
                                 tco=self._tco, tb=tb)            # (2, 2, Bp, Cop, XYp)
        out = out[:, :, :B, :co, :self._xy]
        out_c = (out[:, 0] + 1j * out[:, 1]).reshape(2, B, co, m1, m2)

        # Assemble out_ft by padding/concatenating zero blocks (avoids the
        # zero-init + two full-spectrum scatter writes).
        if 2 * m1 <= H:
            top = jnp.pad(out_c[0], ((0, 0), (0, 0), (0, 0), (0, Wf - m2)))
            bot = jnp.pad(out_c[1], ((0, 0), (0, 0), (0, 0), (0, Wf - m2)))
            mid = jnp.zeros((B, co, H - 2 * m1, Wf), top.dtype)
            out_ft = jnp.concatenate([top, mid, bot], axis=2)     # (B, Co, H, Wf)
        else:  # degenerate overlapping-region case: match PyTorch overwrite order
            out_ft = jnp.zeros((B, co, H, Wf), jnp.complex64)
            out_ft = out_ft.at[:, :, :m1, :m2].set(out_c[0])
            out_ft = out_ft.at[:, :, H - m1:, :m2].set(out_c[1])

        return jnp.fft.irfft2(out_ft, s=(H, W))                   # (B, Co, H, W) f32


if __name__ == "__main__":
    key = jax.random.PRNGKey(0)
    k_param, k_x = jax.random.split(key)

    B, C_in, C_out, H, W = 2, 4, 4, 16, 16
    modes1, modes2 = 4, 4

    layer = SpectralConv2dPallas(C_in, C_out, modes1, modes2, k_param)
    x = jax.random.normal(k_x, (B, C_in, H, W), dtype=jnp.float32)

    y = jax.block_until_ready(layer(x))

    # silent correctness check against a pure-JAX reference of the same math
    x_ft = jnp.fft.rfft2(x)
    ref_ft = jnp.zeros((B, C_out, H, W // 2 + 1), dtype=jnp.complex64)
    ref_ft = ref_ft.at[:, :, :modes1, :modes2].set(
        jnp.einsum('bixy,ioxy->boxy', x_ft[:, :, :modes1, :modes2], layer.weights1))
    ref_ft = ref_ft.at[:, :, -modes1:, :modes2].set(
        jnp.einsum('bixy,ioxy->boxy', x_ft[:, :, -modes1:, :modes2], layer.weights2))
    y_ref = jnp.fft.irfft2(ref_ft, s=(H, W))

    assert y.shape == (B, C_out, H, W)
    assert jnp.allclose(y, y_ref, atol=1e-5, rtol=1e-5)

    print("KERNEL_OK")
</pallas_src>

<mosaic_0001>
module attributes {stable_mosaic.version = 11 : i64} {
  func.func @_spectral_mix_kernel(%arg0: i32, %arg1: i32, %arg2: i32, %arg3: memref<1x2x8x128xf32, #tpu.memory_space<vmem>>, %arg4: memref<1x8x4x128xf32, #tpu.memory_space<vmem>>, %arg5: memref<1x2x2x4x128xf32, #tpu.memory_space<vmem>>) attributes {dimension_semantics = [#tpu.dimension_semantics<parallel>, #tpu.dimension_semantics<parallel>, #tpu.dimension_semantics<parallel>], iteration_bounds = array<i64: 2, 1, 1>, scalar_prefetch = 0 : i64, scratch_operands = 0 : i64, tpu.core_type = #tpu.core_type<tc>, window_params = [{transform_indices = @transform_0, window_bounds = array<i64: 1, 2, 8, 128>}, {pipeline_mode = #tpu.pipeline_mode<synchronous>, transform_indices = @transform_1, window_bounds = array<i64: 1, 8, 4, 128>}, {transform_indices = @transform_2, window_bounds = array<i64: 1, 2, 2, 4, 128>}]} {
    %cst = arith.constant 0.000000e+00 : f32
    %0 = vector.broadcast %cst : f32 to vector<4x128xf32>
    %c0 = arith.constant 0 : index
    %c0_0 = arith.constant 0 : index
    %c0_1 = arith.constant 0 : index
    %c0_2 = arith.constant 0 : index
    %1 = vector.load %arg3[%c0, %c0_0, %c0_1, %c0_2] : memref<1x2x8x128xf32, #tpu.memory_space<vmem>>, vector<1x1x1x128xf32>
    %2 = vector.shape_cast %1 : vector<1x1x1x128xf32> to vector<1x128xf32>
    %c0_3 = arith.constant 0 : index
    %c0_4 = arith.constant 0 : index
    %c4 = arith.constant 4 : index
    %c0_5 = arith.constant 0 : index
    %3 = vector.load %arg3[%c0_3, %c0_4, %c4, %c0_5] : memref<1x2x8x128xf32, #tpu.memory_space<vmem>>, vector<1x1x1x128xf32>
    %4 = vector.shape_cast %3 : vector<1x1x1x128xf32> to vector<1x128xf32>
    %c0_6 = arith.constant 0 : index
    %c0_7 = arith.constant 0 : index
    %c0_8 = arith.constant 0 : index
    %c0_9 = arith.constant 0 : index
    %5 = vector.load %arg4[%c0_6, %c0_7, %c0_8, %c0_9] : memref<1x8x4x128xf32, #tpu.memory_space<vmem>>, vector<1x1x4x128xf32>
    %6 = vector.shape_cast %5 : vector<1x1x4x128xf32> to vector<4x128xf32>
    %c0_10 = arith.constant 0 : index
    %c4_11 = arith.constant 4 : index
    %c0_12 = arith.constant 0 : index
    %c0_13 = arith.constant 0 : index
    %7 = vector.load %arg4[%c0_10, %c4_11, %c0_12, %c0_13] : memref<1x8x4x128xf32, #tpu.memory_space<vmem>>, vector<1x1x4x128xf32>
    %8 = vector.shape_cast %7 : vector<1x1x4x128xf32> to vector<4x128xf32>
    %9 = vector.broadcast %2 : vector<1x128xf32> to vector<4x128xf32>
    %10 = arith.mulf %6, %9 : vector<4x128xf32>
    %11 = vector.broadcast %4 : vector<1x128xf32> to vector<4x128xf32>
    %12 = arith.mulf %8, %11 : vector<4x128xf32>
    %13 = arith.subf %10, %12 : vector<4x128xf32>
    %14 = arith.addf %0, %13 : vector<4x128xf32>
    %15 = vector.broadcast %4 : vector<1x128xf32> to vector<4x128xf32>
    %16 = arith.mulf %6, %15 : vector<4x128xf32>
    %17 = vector.broadcast %2 : vector<1x128xf32> to vector<4x128xf32>
    %18 = arith.mulf %8, %17 : vector<4x128xf32>
    %19 = arith.addf %16, %18 : vector<4x128xf32>
    %20 = arith.addf %0, %19 : vector<4x128xf32>
    %c0_14 = arith.constant 0 : index
    %c0_15 = arith.constant 0 : index
    %c1 = arith.constant 1 : index
    %c0_16 = arith.constant 0 : index
    %21 = vector.load %arg3[%c0_14, %c0_15, %c1, %c0_16] : memref<1x2x8x128xf32, #tpu.memory_space<vmem>>, vector<1x1x1x128xf32>
    %22 = vector.shape_cast %21 : vector<1x1x1x128xf32> to vector<1x128xf32>
    %c0_17 = arith.constant 0 : index
    %c0_18 = arith.constant 0 : index
    %c5 = arith.constant 5 : index
    %c0_19 = arith.constant 0 : index
    %23 = vector.load %arg3[%c0_17, %c0_18, %c5, %c0_19] : memref<1x2x8x128xf32, #tpu.memory_space<vmem>>, vector<1x1x1x128xf32>
    %24 = vector.shape_cast %23 : vector<1x1x1x128xf32> to vector<1x128xf32>
    %c0_20 = arith.constant 0 : index
    %c1_21 = arith.constant 1 : index
    %c0_22 = arith.constant 0 : index
    %c0_23 = arith.constant 0 : index
    %25 = vector.load %arg4[%c0_20, %c1_21, %c0_22, %c0_23] : memref<1x8x4x128xf32, #tpu.memory_space<vmem>>, vector<1x1x4x128xf32>
    %26 = vector.shape_cast %25 : vector<1x1x4x128xf32> to vector<4x128xf32>
    %c0_24 = arith.constant 0 : index
    %c5_25 = arith.constant 5 : index
    %c0_26 = arith.constant 0 : index
    %c0_27 = arith.constant 0 : index
    %27 = vector.load %arg4[%c0_24, %c5_25, %c0_26, %c0_27] : memref<1x8x4x128xf32, #tpu.memory_space<vmem>>, vector<1x1x4x128xf32>
    %28 = vector.shape_cast %27 : vector<1x1x4x128xf32> to vector<4x128xf32>
    %29 = vector.broadcast %22 : vector<1x128xf32> to vector<4x128xf32>
    %30 = arith.mulf %26, %29 : vector<4x128xf32>
    %31 = vector.broadcast %24 : vector<1x128xf32> to vector<4x128xf32>
    %32 = arith.mulf %28, %31 : vector<4x128xf32>
    %33 = arith.subf %30, %32 : vector<4x128xf32>
    %34 = arith.addf %14, %33 : vector<4x128xf32>
    %35 = vector.broadcast %24 : vector<1x128xf32> to vector<4x128xf32>
    %36 = arith.mulf %26, %35 : vector<4x128xf32>
    %37 = vector.broadcast %22 : vector<1x128xf32> to vector<4x128xf32>
    %38 = arith.mulf %28, %37 : vector<4x128xf32>
    %39 = arith.addf %36, %38 : vector<4x128xf32>
    %40 = arith.addf %20, %39 : vector<4x128xf32>
    %c0_28 = arith.constant 0 : index
    %c0_29 = arith.constant 0 : index
    %c2 = arith.constant 2 : index
    %c0_30 = arith.constant 0 : index
    %41 = vector.load %arg3[%c0_28, %c0_29, %c2, %c0_30] : memref<1x2x8x128xf32, #tpu.memory_space<vmem>>, vector<1x1x1x128xf32>
    %42 = vector.shape_cast %41 : vector<1x1x1x128xf32> to vector<1x128xf32>
    %c0_31 = arith.constant 0 : index
    %c0_32 = arith.constant 0 : index
    %c6 = arith.constant 6 : index
    %c0_33 = arith.constant 0 : index
    %43 = vector.load %arg3[%c0_31, %c0_32, %c6, %c0_33] : memref<1x2x8x128xf32, #tpu.memory_space<vmem>>, vector<1x1x1x128xf32>
    %44 = vector.shape_cast %43 : vector<1x1x1x128xf32> to vector<1x128xf32>
    %c0_34 = arith.constant 0 : index
    %c2_35 = arith.constant 2 : index
    %c0_36 = arith.constant 0 : index
    %c0_37 = arith.constant 0 : index
    %45 = vector.load %arg4[%c0_34, %c2_35, %c0_36, %c0_37] : memref<1x8x4x128xf32, #tpu.memory_space<vmem>>, vector<1x1x4x128xf32>
    %46 = vector.shape_cast %45 : vector<1x1x4x128xf32> to vector<4x128xf32>
    %c0_38 = arith.constant 0 : index
    %c6_39 = arith.constant 6 : index
    %c0_40 = arith.constant 0 : index
    %c0_41 = arith.constant 0 : index
    %47 = vector.load %arg4[%c0_38, %c6_39, %c0_40, %c0_41] : memref<1x8x4x128xf32, #tpu.memory_space<vmem>>, vector<1x1x4x128xf32>
    %48 = vector.shape_cast %47 : vector<1x1x4x128xf32> to vector<4x128xf32>
    %49 = vector.broadcast %42 : vector<1x128xf32> to vector<4x128xf32>
    %50 = arith.mulf %46, %49 : vector<4x128xf32>
    %51 = vector.broadcast %44 : vector<1x128xf32> to vector<4x128xf32>
    %52 = arith.mulf %48, %51 : vector<4x128xf32>
    %53 = arith.subf %50, %52 : vector<4x128xf32>
    %54 = arith.addf %34, %53 : vector<4x128xf32>
    %55 = vector.broadcast %44 : vector<1x128xf32> to vector<4x128xf32>
    %56 = arith.mulf %46, %55 : vector<4x128xf32>
    %57 = vector.broadcast %42 : vector<1x128xf32> to vector<4x128xf32>
    %58 = arith.mulf %48, %57 : vector<4x128xf32>
    %59 = arith.addf %56, %58 : vector<4x128xf32>
    %60 = arith.addf %40, %59 : vector<4x128xf32>
    %c0_42 = arith.constant 0 : index
    %c0_43 = arith.constant 0 : index
    %c3 = arith.constant 3 : index
    %c0_44 = arith.constant 0 : index
    %61 = vector.load %arg3[%c0_42, %c0_43, %c3, %c0_44] : memref<1x2x8x128xf32, #tpu.memory_space<vmem>>, vector<1x1x1x128xf32>
    %62 = vector.shape_cast %61 : vector<1x1x1x128xf32> to vector<1x128xf32>
    %c0_45 = arith.constant 0 : index
    %c0_46 = arith.constant 0 : index
    %c7 = arith.constant 7 : index
    %c0_47 = arith.constant 0 : index
    %63 = vector.load %arg3[%c0_45, %c0_46, %c7, %c0_47] : memref<1x2x8x128xf32, #tpu.memory_space<vmem>>, vector<1x1x1x128xf32>
    %64 = vector.shape_cast %63 : vector<1x1x1x128xf32> to vector<1x128xf32>
    %c0_48 = arith.constant 0 : index
    %c3_49 = arith.constant 3 : index
    %c0_50 = arith.constant 0 : index
    %c0_51 = arith.constant 0 : index
    %65 = vector.load %arg4[%c0_48, %c3_49, %c0_50, %c0_51] : memref<1x8x4x128xf32, #tpu.memory_space<vmem>>, vector<1x1x4x128xf32>
    %66 = vector.shape_cast %65 : vector<1x1x4x128xf32> to vector<4x128xf32>
    %c0_52 = arith.constant 0 : index
    %c7_53 = arith.constant 7 : index
    %c0_54 = arith.constant 0 : index
    %c0_55 = arith.constant 0 : index
    %67 = vector.load %arg4[%c0_52, %c7_53, %c0_54, %c0_55] : memref<1x8x4x128xf32, #tpu.memory_space<vmem>>, vector<1x1x4x128xf32>
    %68 = vector.shape_cast %67 : vector<1x1x4x128xf32> to vector<4x128xf32>
    %69 = vector.broadcast %62 : vector<1x128xf32> to vector<4x128xf32>
    %70 = arith.mulf %66, %69 : vector<4x128xf32>
    %71 = vector.broadcast %64 : vector<1x128xf32> to vector<4x128xf32>
    %72 = arith.mulf %68, %71 : vector<4x128xf32>
    %73 = arith.subf %70, %72 : vector<4x128xf32>
    %74 = arith.addf %54, %73 : vector<4x128xf32>
    %75 = vector.broadcast %64 : vector<1x128xf32> to vector<4x128xf32>
    %76 = arith.mulf %66, %75 : vector<4x128xf32>
    %77 = vector.broadcast %62 : vector<1x128xf32> to vector<4x128xf32>
    %78 = arith.mulf %68, %77 : vector<4x128xf32>
    %79 = arith.addf %76, %78 : vector<4x128xf32>
    %80 = arith.addf %60, %79 : vector<4x128xf32>
    %c0_56 = arith.constant 0 : index
    %c0_57 = arith.constant 0 : index
    %c0_58 = arith.constant 0 : index
    %c0_59 = arith.constant 0 : index
    %c0_60 = arith.constant 0 : index
    %81 = vector.load %arg5[%c0_56, %c0_57, %c0_58, %c0_59, %c0_60] : memref<1x2x2x4x128xf32, #tpu.memory_space<vmem>>, vector<1x1x1x4x128xf32>
    %82 = vector.shape_cast %81 : vector<1x1x1x4x128xf32> to vector<4x128xf32>
    %83 = vector.shape_cast %74 : vector<4x128xf32> to vector<1x1x1x4x128xf32>
    tpu.vector_store %arg5[%c0_56, %c0_57, %c0_58, %c0_59, %c0_60], %83 {strides = array<i32>} : memref<1x2x2x4x128xf32, #tpu.memory_space<vmem>>, vector<1x1x1x4x128xf32>,
    %c0_61 = arith.constant 0 : index
    %c1_62 = arith.constant 1 : index
    %c0_63 = arith.constant 0 : index
    %c0_64 = arith.constant 0 : index
    %c0_65 = arith.constant 0 : index
    %84 = vector.load %arg5[%c0_61, %c1_62, %c0_63, %c0_64, %c0_65] : memref<1x2x2x4x128xf32, #tpu.memory_space<vmem>>, vector<1x1x1x4x128xf32>
    %85 = vector.shape_cast %84 : vector<1x1x1x4x128xf32> to vector<4x128xf32>
    %86 = vector.shape_cast %80 : vector<4x128xf32> to vector<1x1x1x4x128xf32>
    tpu.vector_store %arg5[%c0_61, %c1_62, %c0_63, %c0_64, %c0_65], %86 {strides = array<i32>} : memref<1x2x2x4x128xf32, #tpu.memory_space<vmem>>, vector<1x1x1x4x128xf32>,
    %cst_66 = arith.constant 0.000000e+00 : f32
    %87 = vector.broadcast %cst_66 : f32 to vector<4x128xf32>
    %c0_67 = arith.constant 0 : index
    %c1_68 = arith.constant 1 : index
    %c0_69 = arith.constant 0 : index
    %c0_70 = arith.constant 0 : index
    %88 = vector.load %arg3[%c0_67, %c1_68, %c0_69, %c0_70] : memref<1x2x8x128xf32, #tpu.memory_space<vmem>>, vector<1x1x1x128xf32>
    %89 = vector.shape_cast %88 : vector<1x1x1x128xf32> to vector<1x128xf32>
    %c0_71 = arith.constant 0 : index
    %c1_72 = arith.constant 1 : index
    %c4_73 = arith.constant 4 : index
    %c0_74 = arith.constant 0 : index
    %90 = vector.load %arg3[%c0_71, %c1_72, %c4_73, %c0_74] : memref<1x2x8x128xf32, #tpu.memory_space<vmem>>, vector<1x1x1x128xf32>
    %91 = vector.shape_cast %90 : vector<1x1x1x128xf32> to vector<1x128xf32>
    %c0_75 = arith.constant 0 : index
    %c0_76 = arith.constant 0 : index
    %c0_77 = arith.constant 0 : index
    %c0_78 = arith.constant 0 : index
    %92 = vector.load %arg4[%c0_75, %c0_76, %c0_77, %c0_78] : memref<1x8x4x128xf32, #tpu.memory_space<vmem>>, vector<1x1x4x128xf32>
    %93 = vector.shape_cast %92 : vector<1x1x4x128xf32> to vector<4x128xf32>
    %c0_79 = arith.constant 0 : index
    %c4_80 = arith.constant 4 : index
    %c0_81 = arith.constant 0 : index
    %c0_82 = arith.constant 0 : index
    %94 = vector.load %arg4[%c0_79, %c4_80, %c0_81, %c0_82] : memref<1x8x4x128xf32, #tpu.memory_space<vmem>>, vector<1x1x4x128xf32>
    %95 = vector.shape_cast %94 : vector<1x1x4x128xf32> to vector<4x128xf32>
    %96 = vector.broadcast %89 : vector<1x128xf32> to vector<4x128xf32>
    %97 = arith.mulf %93, %96 : vector<4x128xf32>
    %98 = vector.broadcast %91 : vector<1x128xf32> to vector<4x128xf32>
    %99 = arith.mulf %95, %98 : vector<4x128xf32>
    %100 = arith.subf %97, %99 : vector<4x128xf32>
    %101 = arith.addf %87, %100 : vector<4x128xf32>
    %102 = vector.broadcast %91 : vector<1x128xf32> to vector<4x128xf32>
    %103 = arith.mulf %93, %102 : vector<4x128xf32>
    %104 = vector.broadcast %89 : vector<1x128xf32> to vector<4x128xf32>
    %105 = arith.mulf %95, %104 : vector<4x128xf32>
    %106 = arith.addf %103, %105 : vector<4x128xf32>
    %107 = arith.addf %87, %106 : vector<4x128xf32>
    %c0_83 = arith.constant 0 : index
    %c1_84 = arith.constant 1 : index
    %c1_85 = arith.constant 1 : index
    %c0_86 = arith.constant 0 : index
    %108 = vector.load %arg3[%c0_83, %c1_84, %c1_85, %c0_86] : memref<1x2x8x128xf32, #tpu.memory_space<vmem>>, vector<1x1x1x128xf32>
    %109 = vector.shape_cast %108 : vector<1x1x1x128xf32> to vector<1x128xf32>
    %c0_87 = arith.constant 0 : index
    %c1_88 = arith.constant 1 : index
    %c5_89 = arith.constant 5 : index
    %c0_90 = arith.constant 0 : index
    %110 = vector.load %arg3[%c0_87, %c1_88, %c5_89, %c0_90] : memref<1x2x8x128xf32, #tpu.memory_space<vmem>>, vector<1x1x1x128xf32>
    %111 = vector.shape_cast %110 : vector<1x1x1x128xf32> to vector<1x128xf32>
    %c0_91 = arith.constant 0 : index
    %c1_92 = arith.constant 1 : index
    %c0_93 = arith.constant 0 : index
    %c0_94 = arith.constant 0 : index
    %112 = vector.load %arg4[%c0_91, %c1_92, %c0_93, %c0_94] : memref<1x8x4x128xf32, #tpu.memory_space<vmem>>, vector<1x1x4x128xf32>
    %113 = vector.shape_cast %112 : vector<1x1x4x128xf32> to vector<4x128xf32>
    %c0_95 = arith.constant 0 : index
    %c5_96 = arith.constant 5 : index
    %c0_97 = arith.constant 0 : index
    %c0_98 = arith.constant 0 : index
    %114 = vector.load %arg4[%c0_95, %c5_96, %c0_97, %c0_98] : memref<1x8x4x128xf32, #tpu.memory_space<vmem>>, vector<1x1x4x128xf32>
    %115 = vector.shape_cast %114 : vector<1x1x4x128xf32> to vector<4x128xf32>
    %116 = vector.broadcast %109 : vector<1x128xf32> to vector<4x128xf32>
    %117 = arith.mulf %113, %116 : vector<4x128xf32>
    %118 = vector.broadcast %111 : vector<1x128xf32> to vector<4x128xf32>
    %119 = arith.mulf %115, %118 : vector<4x128xf32>
    %120 = arith.subf %117, %119 : vector<4x128xf32>
    %121 = arith.addf %101, %120 : vector<4x128xf32>
    %122 = vector.broadcast %111 : vector<1x128xf32> to vector<4x128xf32>
    %123 = arith.mulf %113, %122 : vector<4x128xf32>
    %124 = vector.broadcast %109 : vector<1x128xf32> to vector<4x128xf32>
    %125 = arith.mulf %115, %124 : vector<4x128xf32>
    %126 = arith.addf %123, %125 : vector<4x128xf32>
    %127 = arith.addf %107, %126 : vector<4x128xf32>
    %c0_99 = arith.constant 0 : index
    %c1_100 = arith.constant 1 : index
    %c2_101 = arith.constant 2 : index
    %c0_102 = arith.constant 0 : index
    %128 = vector.load %arg3[%c0_99, %c1_100, %c2_101, %c0_102] : memref<1x2x8x128xf32, #tpu.memory_space<vmem>>, vector<1x1x1x128xf32>
    %129 = vector.shape_cast %128 : vector<1x1x1x128xf32> to vector<1x128xf32>
    %c0_103 = arith.constant 0 : index
    %c1_104 = arith.constant 1 : index
    %c6_105 = arith.constant 6 : index
    %c0_106 = arith.constant 0 : index
    %130 = vector.load %arg3[%c0_103, %c1_104, %c6_105, %c0_106] : memref<1x2x8x128xf32, #tpu.memory_space<vmem>>, vector<1x1x1x128xf32>
    %131 = vector.shape_cast %130 : vector<1x1x1x128xf32> to vector<1x128xf32>
    %c0_107 = arith.constant 0 : index
    %c2_108 = arith.constant 2 : index
    %c0_109 = arith.constant 0 : index
    %c0_110 = arith.constant 0 : index
    %132 = vector.load %arg4[%c0_107, %c2_108, %c0_109, %c0_110] : memref<1x8x4x128xf32, #tpu.memory_space<vmem>>, vector<1x1x4x128xf32>
    %133 = vector.shape_cast %132 : vector<1x1x4x128xf32> to vector<4x128xf32>
    %c0_111 = arith.constant 0 : index
    %c6_112 = arith.constant 6 : index
    %c0_113 = arith.constant 0 : index
    %c0_114 = arith.constant 0 : index
    %134 = vector.load %arg4[%c0_111, %c6_112, %c0_113, %c0_114] : memref<1x8x4x128xf32, #tpu.memory_space<vmem>>, vector<1x1x4x128xf32>
    %135 = vector.shape_cast %134 : vector<1x1x4x128xf32> to vector<4x128xf32>
    %136 = vector.broadcast %129 : vector<1x128xf32> to vector<4x128xf32>
    %137 = arith.mulf %133, %136 : vector<4x128xf32>
    %138 = vector.broadcast %131 : vector<1x128xf32> to vector<4x128xf32>
    %139 = arith.mulf %135, %138 : vector<4x128xf32>
    %140 = arith.subf %137, %139 : vector<4x128xf32>
    %141 = arith.addf %121, %140 : vector<4x128xf32>
    %142 = vector.broadcast %131 : vector<1x128xf32> to vector<4x128xf32>
    %143 = arith.mulf %133, %142 : vector<4x128xf32>
    %144 = vector.broadcast %129 : vector<1x128xf32> to vector<4x128xf32>
    %145 = arith.mulf %135, %144 : vector<4x128xf32>
    %146 = arith.addf %143, %145 : vector<4x128xf32>
    %147 = arith.addf %127, %146 : vector<4x128xf32>
    %c0_115 = arith.constant 0 : index
    %c1_116 = arith.constant 1 : index
    %c3_117 = arith.constant 3 : index
    %c0_118 = arith.constant 0 : index
    %148 = vector.load %arg3[%c0_115, %c1_116, %c3_117, %c0_118] : memref<1x2x8x128xf32, #tpu.memory_space<vmem>>, vector<1x1x1x128xf32>
    %149 = vector.shape_cast %148 : vector<1x1x1x128xf32> to vector<1x128xf32>
    %c0_119 = arith.constant 0 : index
    %c1_120 = arith.constant 1 : index
    %c7_121 = arith.constant 7 : index
    %c0_122 = arith.constant 0 : index
    %150 = vector.load %arg3[%c0_119, %c1_120, %c7_121, %c0_122] : memref<1x2x8x128xf32, #tpu.memory_space<vmem>>, vector<1x1x1x128xf32>
    %151 = vector.shape_cast %150 : vector<1x1x1x128xf32> to vector<1x128xf32>
    %c0_123 = arith.constant 0 : index
    %c3_124 = arith.constant 3 : index
    %c0_125 = arith.constant 0 : index
    %c0_126 = arith.constant 0 : index
    %152 = vector.load %arg4[%c0_123, %c3_124, %c0_125, %c0_126] : memref<1x8x4x128xf32, #tpu.memory_space<vmem>>, vector<1x1x4x128xf32>
    %153 = vector.shape_cast %152 : vector<1x1x4x128xf32> to vector<4x128xf32>
    %c0_127 = arith.constant 0 : index
    %c7_128 = arith.constant 7 : index
    %c0_129 = arith.constant 0 : index
    %c0_130 = arith.constant 0 : index
    %154 = vector.load %arg4[%c0_127, %c7_128, %c0_129, %c0_130] : memref<1x8x4x128xf32, #tpu.memory_space<vmem>>, vector<1x1x4x128xf32>
    %155 = vector.shape_cast %154 : vector<1x1x4x128xf32> to vector<4x128xf32>
    %156 = vector.broadcast %149 : vector<1x128xf32> to vector<4x128xf32>
    %157 = arith.mulf %153, %156 : vector<4x128xf32>
    %158 = vector.broadcast %151 : vector<1x128xf32> to vector<4x128xf32>
    %159 = arith.mulf %155, %158 : vector<4x128xf32>
    %160 = arith.subf %157, %159 : vector<4x128xf32>
    %161 = arith.addf %141, %160 : vector<4x128xf32>
    %162 = vector.broadcast %151 : vector<1x128xf32> to vector<4x128xf32>
    %163 = arith.mulf %153, %162 : vector<4x128xf32>
    %164 = vector.broadcast %149 : vector<1x128xf32> to vector<4x128xf32>
    %165 = arith.mulf %155, %164 : vector<4x128xf32>
    %166 = arith.addf %163, %165 : vector<4x128xf32>
    %167 = arith.addf %147, %166 : vector<4x128xf32>
    %c0_131 = arith.constant 0 : index
    %c0_132 = arith.constant 0 : index
    %c1_133 = arith.constant 1 : index
    %c0_134 = arith.constant 0 : index
    %c0_135 = arith.constant 0 : index
    %168 = vector.load %arg5[%c0_131, %c0_132, %c1_133, %c0_134, %c0_135] : memref<1x2x2x4x128xf32, #tpu.memory_space<vmem>>, vector<1x1x1x4x128xf32>
    %169 = vector.shape_cast %168 : vector<1x1x1x4x128xf32> to vector<4x128xf32>
    %170 = vector.shape_cast %161 : vector<4x128xf32> to vector<1x1x1x4x128xf32>
    tpu.vector_store %arg5[%c0_131, %c0_132, %c1_133, %c0_134, %c0_135], %170 {strides = array<i32>} : memref<1x2x2x4x128xf32, #tpu.memory_space<vmem>>, vector<1x1x1x4x128xf32>,
    %c0_136 = arith.constant 0 : index
    %c1_137 = arith.constant 1 : index
    %c1_138 = arith.constant 1 : index
    %c0_139 = arith.constant 0 : index
    %c0_140 = arith.constant 0 : index
    %171 = vector.load %arg5[%c0_136, %c1_137, %c1_138, %c0_139, %c0_140] : memref<1x2x2x4x128xf32, #tpu.memory_space<vmem>>, vector<1x1x1x4x128xf32>
    %172 = vector.shape_cast %171 : vector<1x1x1x4x128xf32> to vector<4x128xf32>
    %173 = vector.shape_cast %167 : vector<4x128xf32> to vector<1x1x1x4x128xf32>
    tpu.vector_store %arg5[%c0_136, %c1_137, %c1_138, %c0_139, %c0_140], %173 {strides = array<i32>} : memref<1x2x2x4x128xf32, #tpu.memory_space<vmem>>, vector<1x1x1x4x128xf32>,
    return
  }
  func.func @transform_0(%arg0: i32, %arg1: i32, %arg2: i32) -> (i32, i32, i32, i32) {
    %c0_i32 = arith.constant 0 : i32
    %c0_i32_0 = arith.constant 0 : i32
    %c0_i32_1 = arith.constant 0 : i32
    return %arg0, %arg2, %c0_i32, %c0_i32_0 : i32, i32, i32, i32
  }
  func.func @transform_1(%arg0: i32, %arg1: i32, %arg2: i32) -> (i32, i32, i32, i32) {
    %c0_i32 = arith.constant 0 : i32
    %c0_i32_0 = arith.constant 0 : i32
    %c0_i32_1 = arith.constant 0 : i32
    return %arg0, %c0_i32, %arg1, %c0_i32_0 : i32, i32, i32, i32
  }
  func.func @transform_2(%arg0: i32, %arg1: i32, %arg2: i32) -> (i32, i32, i32, i32, i32) {
    %c0_i32 = arith.constant 0 : i32
    %c0_i32_0 = arith.constant 0 : i32
    %c0_i32_1 = arith.constant 0 : i32
    return %arg0, %c0_i32, %arg2, %arg1, %c0_i32_0 : i32, i32, i32, i32, i32
  }
}

module attributes {stable_mosaic.version = 11 : i64} {
  func.func @_spectral_mix_kernel(%arg0: i32, %arg1: i32, %arg2: i32, %arg3: memref<1x2x8x128xf32, #tpu.memory_space<vmem>>, %arg4: memref<1x8x4x128xf32, #tpu.memory_space<vmem>>, %arg5: memref<1x2x2x4x128xf32, #tpu.memory_space<vmem>>) attributes {dimension_semantics = [#tpu.dimension_semantics<parallel>, #tpu.dimension_semantics<parallel>, #tpu.dimension_semantics<parallel>], iteration_bounds = array<i64: 2, 1, 1>, scalar_prefetch = 0 : i64, scratch_operands = 0 : i64, tpu.core_type = #tpu.core_type<tc>, window_params = [{transform_indices = @transform_0, window_bounds = array<i64: 1, 2, 8, 128>}, {transform_indices = @transform_1, window_bounds = array<i64: 1, 8, 4, 128>}, {transform_indices = @transform_2, window_bounds = array<i64: 1, 2, 2, 4, 128>}]} {
    %cst = arith.constant 0.000000e+00 : f32
    %0 = vector.broadcast %cst : f32 to vector<4x128xf32>
    %c0 = arith.constant 0 : index
    %c0_0 = arith.constant 0 : index
    %c0_1 = arith.constant 0 : index
    %c0_2 = arith.constant 0 : index
    %1 = vector.load %arg3[%c0, %c0_0, %c0_1, %c0_2] : memref<1x2x8x128xf32, #tpu.memory_space<vmem>>, vector<1x1x1x128xf32>
    %2 = vector.shape_cast %1 : vector<1x1x1x128xf32> to vector<1x128xf32>
    %c0_3 = arith.constant 0 : index
    %c0_4 = arith.constant 0 : index
    %c4 = arith.constant 4 : index
    %c0_5 = arith.constant 0 : index
    %3 = vector.load %arg3[%c0_3, %c0_4, %c4, %c0_5] : memref<1x2x8x128xf32, #tpu.memory_space<vmem>>, vector<1x1x1x128xf32>
    %4 = vector.shape_cast %3 : vector<1x1x1x128xf32> to vector<1x128xf32>
    %c0_6 = arith.constant 0 : index
    %c0_7 = arith.constant 0 : index
    %c0_8 = arith.constant 0 : index
    %c0_9 = arith.constant 0 : index
    %5 = vector.load %arg4[%c0_6, %c0_7, %c0_8, %c0_9] : memref<1x8x4x128xf32, #tpu.memory_space<vmem>>, vector<1x1x4x128xf32>
    %6 = vector.shape_cast %5 : vector<1x1x4x128xf32> to vector<4x128xf32>
    %c0_10 = arith.constant 0 : index
    %c4_11 = arith.constant 4 : index
    %c0_12 = arith.constant 0 : index
    %c0_13 = arith.constant 0 : index
    %7 = vector.load %arg4[%c0_10, %c4_11, %c0_12, %c0_13] : memref<1x8x4x128xf32, #tpu.memory_space<vmem>>, vector<1x1x4x128xf32>
    %8 = vector.shape_cast %7 : vector<1x1x4x128xf32> to vector<4x128xf32>
    %9 = vector.broadcast %2 : vector<1x128xf32> to vector<4x128xf32>
    %10 = arith.mulf %6, %9 : vector<4x128xf32>
    %11 = vector.broadcast %4 : vector<1x128xf32> to vector<4x128xf32>
    %12 = arith.mulf %8, %11 : vector<4x128xf32>
    %13 = arith.subf %10, %12 : vector<4x128xf32>
    %14 = arith.addf %0, %13 : vector<4x128xf32>
    %15 = vector.broadcast %4 : vector<1x128xf32> to vector<4x128xf32>
    %16 = arith.mulf %6, %15 : vector<4x128xf32>
    %17 = vector.broadcast %2 : vector<1x128xf32> to vector<4x128xf32>
    %18 = arith.mulf %8, %17 : vector<4x128xf32>
    %19 = arith.addf %16, %18 : vector<4x128xf32>
    %20 = arith.addf %0, %19 : vector<4x128xf32>
    %c0_14 = arith.constant 0 : index
    %c0_15 = arith.constant 0 : index
    %c1 = arith.constant 1 : index
    %c0_16 = arith.constant 0 : index
    %21 = vector.load %arg3[%c0_14, %c0_15, %c1, %c0_16] : memref<1x2x8x128xf32, #tpu.memory_space<vmem>>, vector<1x1x1x128xf32>
    %22 = vector.shape_cast %21 : vector<1x1x1x128xf32> to vector<1x128xf32>
    %c0_17 = arith.constant 0 : index
    %c0_18 = arith.constant 0 : index
    %c5 = arith.constant 5 : index
    %c0_19 = arith.constant 0 : index
    %23 = vector.load %arg3[%c0_17, %c0_18, %c5, %c0_19] : memref<1x2x8x128xf32, #tpu.memory_space<vmem>>, vector<1x1x1x128xf32>
    %24 = vector.shape_cast %23 : vector<1x1x1x128xf32> to vector<1x128xf32>
    %c0_20 = arith.constant 0 : index
    %c1_21 = arith.constant 1 : index
    %c0_22 = arith.constant 0 : index
    %c0_23 = arith.constant 0 : index
    %25 = vector.load %arg4[%c0_20, %c1_21, %c0_22, %c0_23] : memref<1x8x4x128xf32, #tpu.memory_space<vmem>>, vector<1x1x4x128xf32>
    %26 = vector.shape_cast %25 : vector<1x1x4x128xf32> to vector<4x128xf32>
    %c0_24 = arith.constant 0 : index
    %c5_25 = arith.constant 5 : index
    %c0_26 = arith.constant 0 : index
    %c0_27 = arith.constant 0 : index
    %27 = vector.load %arg4[%c0_24, %c5_25, %c0_26, %c0_27] : memref<1x8x4x128xf32, #tpu.memory_space<vmem>>, vector<1x1x4x128xf32>
    %28 = vector.shape_cast %27 : vector<1x1x4x128xf32> to vector<4x128xf32>
    %29 = vector.broadcast %22 : vector<1x128xf32> to vector<4x128xf32>
    %30 = arith.mulf %26, %29 : vector<4x128xf32>
    %31 = vector.broadcast %24 : vector<1x128xf32> to vector<4x128xf32>
    %32 = arith.mulf %28, %31 : vector<4x128xf32>
    %33 = arith.subf %30, %32 : vector<4x128xf32>
    %34 = arith.addf %14, %33 : vector<4x128xf32>
    %35 = vector.broadcast %24 : vector<1x128xf32> to vector<4x128xf32>
    %36 = arith.mulf %26, %35 : vector<4x128xf32>
    %37 = vector.broadcast %22 : vector<1x128xf32> to vector<4x128xf32>
    %38 = arith.mulf %28, %37 : vector<4x128xf32>
    %39 = arith.addf %36, %38 : vector<4x128xf32>
    %40 = arith.addf %20, %39 : vector<4x128xf32>
    %c0_28 = arith.constant 0 : index
    %c0_29 = arith.constant 0 : index
    %c2 = arith.constant 2 : index
    %c0_30 = arith.constant 0 : index
    %41 = vector.load %arg3[%c0_28, %c0_29, %c2, %c0_30] : memref<1x2x8x128xf32, #tpu.memory_space<vmem>>, vector<1x1x1x128xf32>
    %42 = vector.shape_cast %41 : vector<1x1x1x128xf32> to vector<1x128xf32>
    %c0_31 = arith.constant 0 : index
    %c0_32 = arith.constant 0 : index
    %c6 = arith.constant 6 : index
    %c0_33 = arith.constant 0 : index
    %43 = vector.load %arg3[%c0_31, %c0_32, %c6, %c0_33] : memref<1x2x8x128xf32, #tpu.memory_space<vmem>>, vector<1x1x1x128xf32>
    %44 = vector.shape_cast %43 : vector<1x1x1x128xf32> to vector<1x128xf32>
    %c0_34 = arith.constant 0 : index
    %c2_35 = arith.constant 2 : index
    %c0_36 = arith.constant 0 : index
    %c0_37 = arith.constant 0 : index
    %45 = vector.load %arg4[%c0_34, %c2_35, %c0_36, %c0_37] : memref<1x8x4x128xf32, #tpu.memory_space<vmem>>, vector<1x1x4x128xf32>
    %46 = vector.shape_cast %45 : vector<1x1x4x128xf32> to vector<4x128xf32>
    %c0_38 = arith.constant 0 : index
    %c6_39 = arith.constant 6 : index
    %c0_40 = arith.constant 0 : index
    %c0_41 = arith.constant 0 : index
    %47 = vector.load %arg4[%c0_38, %c6_39, %c0_40, %c0_41] : memref<1x8x4x128xf32, #tpu.memory_space<vmem>>, vector<1x1x4x128xf32>
    %48 = vector.shape_cast %47 : vector<1x1x4x128xf32> to vector<4x128xf32>
    %49 = vector.broadcast %42 : vector<1x128xf32> to vector<4x128xf32>
    %50 = arith.mulf %46, %49 : vector<4x128xf32>
    %51 = vector.broadcast %44 : vector<1x128xf32> to vector<4x128xf32>
    %52 = arith.mulf %48, %51 : vector<4x128xf32>
    %53 = arith.subf %50, %52 : vector<4x128xf32>
    %54 = arith.addf %34, %53 : vector<4x128xf32>
    %55 = vector.broadcast %44 : vector<1x128xf32> to vector<4x128xf32>
    %56 = arith.mulf %46, %55 : vector<4x128xf32>
    %57 = vector.broadcast %42 : vector<1x128xf32> to vector<4x128xf32>
    %58 = arith.mulf %48, %57 : vector<4x128xf32>
    %59 = arith.addf %56, %58 : vector<4x128xf32>
    %60 = arith.addf %40, %59 : vector<4x128xf32>
    %c0_42 = arith.constant 0 : index
    %c0_43 = arith.constant 0 : index
    %c3 = arith.constant 3 : index
    %c0_44 = arith.constant 0 : index
    %61 = vector.load %arg3[%c0_42, %c0_43, %c3, %c0_44] : memref<1x2x8x128xf32, #tpu.memory_space<vmem>>, vector<1x1x1x128xf32>
    %62 = vector.shape_cast %61 : vector<1x1x1x128xf32> to vector<1x128xf32>
    %c0_45 = arith.constant 0 : index
    %c0_46 = arith.constant 0 : index
    %c7 = arith.constant 7 : index
    %c0_47 = arith.constant 0 : index
    %63 = vector.load %arg3[%c0_45, %c0_46, %c7, %c0_47] : memref<1x2x8x128xf32, #tpu.memory_space<vmem>>, vector<1x1x1x128xf32>
    %64 = vector.shape_cast %63 : vector<1x1x1x128xf32> to vector<1x128xf32>
    %c0_48 = arith.constant 0 : index
    %c3_49 = arith.constant 3 : index
    %c0_50 = arith.constant 0 : index
    %c0_51 = arith.constant 0 : index
    %65 = vector.load %arg4[%c0_48, %c3_49, %c0_50, %c0_51] : memref<1x8x4x128xf32, #tpu.memory_space<vmem>>, vector<1x1x4x128xf32>
    %66 = vector.shape_cast %65 : vector<1x1x4x128xf32> to vector<4x128xf32>
    %c0_52 = arith.constant 0 : index
    %c7_53 = arith.constant 7 : index
    %c0_54 = arith.constant 0 : index
    %c0_55 = arith.constant 0 : index
    %67 = vector.load %arg4[%c0_52, %c7_53, %c0_54, %c0_55] : memref<1x8x4x128xf32, #tpu.memory_space<vmem>>, vector<1x1x4x128xf32>
    %68 = vector.shape_cast %67 : vector<1x1x4x128xf32> to vector<4x128xf32>
    %69 = vector.broadcast %62 : vector<1x128xf32> to vector<4x128xf32>
    %70 = arith.mulf %66, %69 : vector<4x128xf32>
    %71 = vector.broadcast %64 : vector<1x128xf32> to vector<4x128xf32>
    %72 = arith.mulf %68, %71 : vector<4x128xf32>
    %73 = arith.subf %70, %72 : vector<4x128xf32>
    %74 = arith.addf %54, %73 : vector<4x128xf32>
    %75 = vector.broadcast %64 : vector<1x128xf32> to vector<4x128xf32>
    %76 = arith.mulf %66, %75 : vector<4x128xf32>
    %77 = vector.broadcast %62 : vector<1x128xf32> to vector<4x128xf32>
    %78 = arith.mulf %68, %77 : vector<4x128xf32>
    %79 = arith.addf %76, %78 : vector<4x128xf32>
    %80 = arith.addf %60, %79 : vector<4x128xf32>
    %c0_56 = arith.constant 0 : index
    %c0_57 = arith.constant 0 : index
    %c0_58 = arith.constant 0 : index
    %c0_59 = arith.constant 0 : index
    %c0_60 = arith.constant 0 : index
    %81 = vector.load %arg5[%c0_56, %c0_57, %c0_58, %c0_59, %c0_60] : memref<1x2x2x4x128xf32, #tpu.memory_space<vmem>>, vector<1x1x1x4x128xf32>
    %82 = vector.shape_cast %81 : vector<1x1x1x4x128xf32> to vector<4x128xf32>
    %83 = vector.shape_cast %74 : vector<4x128xf32> to vector<1x1x1x4x128xf32>
    tpu.vector_store %arg5[%c0_56, %c0_57, %c0_58, %c0_59, %c0_60], %83 {strides = array<i32>} : memref<1x2x2x4x128xf32, #tpu.memory_space<vmem>>, vector<1x1x1x4x128xf32>,
    %c0_61 = arith.constant 0 : index
    %c1_62 = arith.constant 1 : index
    %c0_63 = arith.constant 0 : index
    %c0_64 = arith.constant 0 : index
    %c0_65 = arith.constant 0 : index
    %84 = vector.load %arg5[%c0_61, %c1_62, %c0_63, %c0_64, %c0_65] : memref<1x2x2x4x128xf32, #tpu.memory_space<vmem>>, vector<1x1x1x4x128xf32>
    %85 = vector.shape_cast %84 : vector<1x1x1x4x128xf32> to vector<4x128xf32>
    %86 = vector.shape_cast %80 : vector<4x128xf32> to vector<1x1x1x4x128xf32>
    tpu.vector_store %arg5[%c0_61, %c1_62, %c0_63, %c0_64, %c0_65], %86 {strides = array<i32>} : memref<1x2x2x4x128xf32, #tpu.memory_space<vmem>>, vector<1x1x1x4x128xf32>,
    %cst_66 = arith.constant 0.000000e+00 : f32
    %87 = vector.broadcast %cst_66 : f32 to vector<4x128xf32>
    %c0_67 = arith.constant 0 : index
    %c1_68 = arith.constant 1 : index
    %c0_69 = arith.constant 0 : index
    %c0_70 = arith.constant 0 : index
    %88 = vector.load %arg3[%c0_67, %c1_68, %c0_69, %c0_70] : memref<1x2x8x128xf32, #tpu.memory_space<vmem>>, vector<1x1x1x128xf32>
    %89 = vector.shape_cast %88 : vector<1x1x1x128xf32> to vector<1x128xf32>
    %c0_71 = arith.constant 0 : index
    %c1_72 = arith.constant 1 : index
    %c4_73 = arith.constant 4 : index
    %c0_74 = arith.constant 0 : index
    %90 = vector.load %arg3[%c0_71, %c1_72, %c4_73, %c0_74] : memref<1x2x8x128xf32, #tpu.memory_space<vmem>>, vector<1x1x1x128xf32>
    %91 = vector.shape_cast %90 : vector<1x1x1x128xf32> to vector<1x128xf32>
    %c0_75 = arith.constant 0 : index
    %c0_76 = arith.constant 0 : index
    %c0_77 = arith.constant 0 : index
    %c0_78 = arith.constant 0 : index
    %92 = vector.load %arg4[%c0_75, %c0_76, %c0_77, %c0_78] : memref<1x8x4x128xf32, #tpu.memory_space<vmem>>, vector<1x1x4x128xf32>
    %93 = vector.shape_cast %92 : vector<1x1x4x128xf32> to vector<4x128xf32>
    %c0_79 = arith.constant 0 : index
    %c4_80 = arith.constant 4 : index
    %c0_81 = arith.constant 0 : index
    %c0_82 = arith.constant 0 : index
    %94 = vector.load %arg4[%c0_79, %c4_80, %c0_81, %c0_82] : memref<1x8x4x128xf32, #tpu.memory_space<vmem>>, vector<1x1x4x128xf32>
    %95 = vector.shape_cast %94 : vector<1x1x4x128xf32> to vector<4x128xf32>
    %96 = vector.broadcast %89 : vector<1x128xf32> to vector<4x128xf32>
    %97 = arith.mulf %93, %96 : vector<4x128xf32>
    %98 = vector.broadcast %91 : vector<1x128xf32> to vector<4x128xf32>
    %99 = arith.mulf %95, %98 : vector<4x128xf32>
    %100 = arith.subf %97, %99 : vector<4x128xf32>
    %101 = arith.addf %87, %100 : vector<4x128xf32>
    %102 = vector.broadcast %91 : vector<1x128xf32> to vector<4x128xf32>
    %103 = arith.mulf %93, %102 : vector<4x128xf32>
    %104 = vector.broadcast %89 : vector<1x128xf32> to vector<4x128xf32>
    %105 = arith.mulf %95, %104 : vector<4x128xf32>
    %106 = arith.addf %103, %105 : vector<4x128xf32>
    %107 = arith.addf %87, %106 : vector<4x128xf32>
    %c0_83 = arith.constant 0 : index
    %c1_84 = arith.constant 1 : index
    %c1_85 = arith.constant 1 : index
    %c0_86 = arith.constant 0 : index
    %108 = vector.load %arg3[%c0_83, %c1_84, %c1_85, %c0_86] : memref<1x2x8x128xf32, #tpu.memory_space<vmem>>, vector<1x1x1x128xf32>
    %109 = vector.shape_cast %108 : vector<1x1x1x128xf32> to vector<1x128xf32>
    %c0_87 = arith.constant 0 : index
    %c1_88 = arith.constant 1 : index
    %c5_89 = arith.constant 5 : index
    %c0_90 = arith.constant 0 : index
    %110 = vector.load %arg3[%c0_87, %c1_88, %c5_89, %c0_90] : memref<1x2x8x128xf32, #tpu.memory_space<vmem>>, vector<1x1x1x128xf32>
    %111 = vector.shape_cast %110 : vector<1x1x1x128xf32> to vector<1x128xf32>
    %c0_91 = arith.constant 0 : index
    %c1_92 = arith.constant 1 : index
    %c0_93 = arith.constant 0 : index
    %c0_94 = arith.constant 0 : index
    %112 = vector.load %arg4[%c0_91, %c1_92, %c0_93, %c0_94] : memref<1x8x4x128xf32, #tpu.memory_space<vmem>>, vector<1x1x4x128xf32>
    %113 = vector.shape_cast %112 : vector<1x1x4x128xf32> to vector<4x128xf32>
    %c0_95 = arith.constant 0 : index
    %c5_96 = arith.constant 5 : index
    %c0_97 = arith.constant 0 : index
    %c0_98 = arith.constant 0 : index
    %114 = vector.load %arg4[%c0_95, %c5_96, %c0_97, %c0_98] : memref<1x8x4x128xf32, #tpu.memory_space<vmem>>, vector<1x1x4x128xf32>
    %115 = vector.shape_cast %114 : vector<1x1x4x128xf32> to vector<4x128xf32>
    %116 = vector.broadcast %109 : vector<1x128xf32> to vector<4x128xf32>
    %117 = arith.mulf %113, %116 : vector<4x128xf32>
    %118 = vector.broadcast %111 : vector<1x128xf32> to vector<4x128xf32>
    %119 = arith.mulf %115, %118 : vector<4x128xf32>
    %120 = arith.subf %117, %119 : vector<4x128xf32>
    %121 = arith.addf %101, %120 : vector<4x128xf32>
    %122 = vector.broadcast %111 : vector<1x128xf32> to vector<4x128xf32>
    %123 = arith.mulf %113, %122 : vector<4x128xf32>
    %124 = vector.broadcast %109 : vector<1x128xf32> to vector<4x128xf32>
    %125 = arith.mulf %115, %124 : vector<4x128xf32>
    %126 = arith.addf %123, %125 : vector<4x128xf32>
    %127 = arith.addf %107, %126 : vector<4x128xf32>
    %c0_99 = arith.constant 0 : index
    %c1_100 = arith.constant 1 : index
    %c2_101 = arith.constant 2 : index
    %c0_102 = arith.constant 0 : index
    %128 = vector.load %arg3[%c0_99, %c1_100, %c2_101, %c0_102] : memref<1x2x8x128xf32, #tpu.memory_space<vmem>>, vector<1x1x1x128xf32>
    %129 = vector.shape_cast %128 : vector<1x1x1x128xf32> to vector<1x128xf32>
    %c0_103 = arith.constant 0 : index
    %c1_104 = arith.constant 1 : index
    %c6_105 = arith.constant 6 : index
    %c0_106 = arith.constant 0 : index
    %130 = vector.load %arg3[%c0_103, %c1_104, %c6_105, %c0_106] : memref<1x2x8x128xf32, #tpu.memory_space<vmem>>, vector<1x1x1x128xf32>
    %131 = vector.shape_cast %130 : vector<1x1x1x128xf32> to vector<1x128xf32>
    %c0_107 = arith.constant 0 : index
    %c2_108 = arith.constant 2 : index
    %c0_109 = arith.constant 0 : index
    %c0_110 = arith.constant 0 : index
    %132 = vector.load %arg4[%c0_107, %c2_108, %c0_109, %c0_110] : memref<1x8x4x128xf32, #tpu.memory_space<vmem>>, vector<1x1x4x128xf32>
    %133 = vector.shape_cast %132 : vector<1x1x4x128xf32> to vector<4x128xf32>
    %c0_111 = arith.constant 0 : index
    %c6_112 = arith.constant 6 : index
    %c0_113 = arith.constant 0 : index
    %c0_114 = arith.constant 0 : index
    %134 = vector.load %arg4[%c0_111, %c6_112, %c0_113, %c0_114] : memref<1x8x4x128xf32, #tpu.memory_space<vmem>>, vector<1x1x4x128xf32>
    %135 = vector.shape_cast %134 : vector<1x1x4x128xf32> to vector<4x128xf32>
    %136 = vector.broadcast %129 : vector<1x128xf32> to vector<4x128xf32>
    %137 = arith.mulf %133, %136 : vector<4x128xf32>
    %138 = vector.broadcast %131 : vector<1x128xf32> to vector<4x128xf32>
    %139 = arith.mulf %135, %138 : vector<4x128xf32>
    %140 = arith.subf %137, %139 : vector<4x128xf32>
    %141 = arith.addf %121, %140 : vector<4x128xf32>
    %142 = vector.broadcast %131 : vector<1x128xf32> to vector<4x128xf32>
    %143 = arith.mulf %133, %142 : vector<4x128xf32>
    %144 = vector.broadcast %129 : vector<1x128xf32> to vector<4x128xf32>
    %145 = arith.mulf %135, %144 : vector<4x128xf32>
    %146 = arith.addf %143, %145 : vector<4x128xf32>
    %147 = arith.addf %127, %146 : vector<4x128xf32>
    %c0_115 = arith.constant 0 : index
    %c1_116 = arith.constant 1 : index
    %c3_117 = arith.constant 3 : index
    %c0_118 = arith.constant 0 : index
    %148 = vector.load %arg3[%c0_115, %c1_116, %c3_117, %c0_118] : memref<1x2x8x128xf32, #tpu.memory_space<vmem>>, vector<1x1x1x128xf32>
    %149 = vector.shape_cast %148 : vector<1x1x1x128xf32> to vector<1x128xf32>
    %c0_119 = arith.constant 0 : index
    %c1_120 = arith.constant 1 : index
    %c7_121 = arith.constant 7 : index
    %c0_122 = arith.constant 0 : index
    %150 = vector.load %arg3[%c0_119, %c1_120, %c7_121, %c0_122] : memref<1x2x8x128xf32, #tpu.memory_space<vmem>>, vector<1x1x1x128xf32>
    %151 = vector.shape_cast %150 : vector<1x1x1x128xf32> to vector<1x128xf32>
    %c0_123 = arith.constant 0 : index
    %c3_124 = arith.constant 3 : index
    %c0_125 = arith.constant 0 : index
    %c0_126 = arith.constant 0 : index
    %152 = vector.load %arg4[%c0_123, %c3_124, %c0_125, %c0_126] : memref<1x8x4x128xf32, #tpu.memory_space<vmem>>, vector<1x1x4x128xf32>
    %153 = vector.shape_cast %152 : vector<1x1x4x128xf32> to vector<4x128xf32>
    %c0_127 = arith.constant 0 : index
    %c7_128 = arith.constant 7 : index
    %c0_129 = arith.constant 0 : index
    %c0_130 = arith.constant 0 : index
    %154 = vector.load %arg4[%c0_127, %c7_128, %c0_129, %c0_130] : memref<1x8x4x128xf32, #tpu.memory_space<vmem>>, vector<1x1x4x128xf32>
    %155 = vector.shape_cast %154 : vector<1x1x4x128xf32> to vector<4x128xf32>
    %156 = vector.broadcast %149 : vector<1x128xf32> to vector<4x128xf32>
    %157 = arith.mulf %153, %156 : vector<4x128xf32>
    %158 = vector.broadcast %151 : vector<1x128xf32> to vector<4x128xf32>
    %159 = arith.mulf %155, %158 : vector<4x128xf32>
    %160 = arith.subf %157, %159 : vector<4x128xf32>
    %161 = arith.addf %141, %160 : vector<4x128xf32>
    %162 = vector.broadcast %151 : vector<1x128xf32> to vector<4x128xf32>
    %163 = arith.mulf %153, %162 : vector<4x128xf32>
    %164 = vector.broadcast %149 : vector<1x128xf32> to vector<4x128xf32>
    %165 = arith.mulf %155, %164 : vector<4x128xf32>
    %166 = arith.addf %163, %165 : vector<4x128xf32>
    %167 = arith.addf %147, %166 : vector<4x128xf32>
    %c0_131 = arith.constant 0 : index
    %c0_132 = arith.constant 0 : index
    %c1_133 = arith.constant 1 : index
    %c0_134 = arith.constant 0 : index
    %c0_135 = arith.constant 0 : index
    %168 = vector.load %arg5[%c0_131, %c0_132, %c1_133, %c0_134, %c0_135] : memref<1x2x2x4x128xf32, #tpu.memory_space<vmem>>, vector<1x1x1x4x128xf32>
    %169 = vector.shape_cast %168 : vector<1x1x1x4x128xf32> to vector<4x128xf32>
    %170 = vector.shape_cast %161 : vector<4x128xf32> to vector<1x1x1x4x128xf32>
    tpu.vector_store %arg5[%c0_131, %c0_132, %c1_133, %c0_134, %c0_135], %170 {strides = array<i32>} : memref<1x2x2x4x128xf32, #tpu.memory_space<vmem>>, vector<1x1x1x4x128xf32>,
    %c0_136 = arith.constant 0 : index
    %c1_137 = arith.constant 1 : index
    %c1_138 = arith.constant 1 : index
    %c0_139 = arith.constant 0 : index
    %c0_140 = arith.constant 0 : index
    %171 = vector.load %arg5[%c0_136, %c1_137, %c1_138, %c0_139, %c0_140] : memref<1x2x2x4x128xf32, #tpu.memory_space<vmem>>, vector<1x1x1x4x128xf32>
    %172 = vector.shape_cast %171 : vector<1x1x1x4x128xf32> to vector<4x128xf32>
    %173 = vector.shape_cast %167 : vector<4x128xf32> to vector<1x1x1x4x128xf32>
    tpu.vector_store %arg5[%c0_136, %c1_137, %c1_138, %c0_139, %c0_140], %173 {strides = array<i32>} : memref<1x2x2x4x128xf32, #tpu.memory_space<vmem>>, vector<1x1x1x4x128xf32>,
    return
  }
  func.func @transform_0(%arg0: i32, %arg1: i32, %arg2: i32) -> (i32, i32, i32, i32) {
    %c0_i32 = arith.constant 0 : i32
    %c0_i32_0 = arith.constant 0 : i32
    %c0_i32_1 = arith.constant 0 : i32
    return %arg0, %arg2, %c0_i32, %c0_i32_0 : i32, i32, i32, i32
  }
  func.func @transform_1(%arg0: i32, %arg1: i32, %arg2: i32) -> (i32, i32, i32, i32) {
    %c0_i32 = arith.constant 0 : i32
    %c0_i32_0 = arith.constant 0 : i32
    %c0_i32_1 = arith.constant 0 : i32
    return %arg0, %c0_i32, %arg1, %c0_i32_0 : i32, i32, i32, i32
  }
  func.func @transform_2(%arg0: i32, %arg1: i32, %arg2: i32) -> (i32, i32, i32, i32, i32) {
    %c0_i32 = arith.constant 0 : i32
    %c0_i32_0 = arith.constant 0 : i32
    %c0_i32_1 = arith.constant 0 : i32
    return %arg0, %c0_i32, %arg2, %arg1, %c0_i32_0 : i32, i32, i32, i32, i32
  }
}

</mosaic_0001>

<llo_original>
// kernel: tpu_custom_call.1
$region0: #{tpu_custom_call.1}
  #allocation0 [shape = 'u32[]', space=smem, size = 0x4, offset = 0x4, fixed_abs, tag = 'smem constant byte address 0x4 - core index']
  #allocation1 [shape = 'u32[144,128]{1,0:T(1,128)}', space=vmem, size = 0x12000, scoped, tag = 'internal scratch']
  %s0 = inlined_call_operand.hbm [shape: f32[2,2,8,128], index: 0, kind: input, shape index: {}]
  %s1 = inlined_call_operand.hbm [shape: f32[2,8,4,128], index: 1, kind: input, shape index: {}]
  %s2 = inlined_call_operand.hbm [shape: f32[2,2,2,4,128], index: 2, kind: output, shape index: {}]
  %s3 = sld [smem:[#allocation0]]
  $region49: #{tpu_custom_call.1} parent=0
    _
  %s5 = ssub.s32 1, %s3
  %s6 = scalar_select 0, %s5, %s3
  $region1: #{tpu_custom_call.1} parent=0
    #allocation2 [shape = 'u8[16384]{0}', space=vmem, size = 0x4000, scoped, tag = 'input window, operand 0']
    #allocation3 [shape = 's32[2]{0}', space=sflag, size = 0x8, scoped, tag = 'scoped memory for tpu_custom_call.1']
    #allocation4 [shape = 's32[2]{0}', space=sflag, size = 0x8, scoped, tag = 'scoped memory for tpu_custom_call.1']
    #allocation5 [shape = 'u8[16384]{0}', space=vmem, size = 0x4000, scoped, tag = 'input window, operand 1, single buffered']
    #allocation6 [shape = 's32[1]{0}', space=sflag, size = 0x4, scoped, tag = 'scoped memory for tpu_custom_call.1']
    #allocation7 [shape = 'u8[16384]{0}', space=vmem, size = 0x4000, scoped, tag = 'output window, operand 0']
    %7 = vsyncpa [#allocation3], 0
    %s8 = scalar_lea.sflag [#allocation3], 1
    %9 = vsyncpa %s8, 0
    %10 = vsyncpa [#allocation6], 0
    %11 = vsyncpa [#allocation4], 0
    %s12 = scalar_lea.sflag [#allocation4], 1
    %13 = vsyncpa %s12, 0
    loop: start=0, step=1, limit=4
    $region2: #{tpu_custom_call.1} parent=1 // loop_pre_header
      _
    $region3: #{tpu_custom_call.1} parent=1 // loop_header
      %s15 = sphi 0, %s19
      %p16 = scmp.ge.s32.totalorder %s15, 4
      %s22 = sphi 0, %s41
      %s23 = sphi 0, %s37
      %s24 = sphi 0, %s33
      %s25 = sphi 0, %s22
      %s26 = sphi 0, %s23
      %s27 = sphi 0, %s24
      %s28 = sphi 0, %s25
      %s29 = sphi 0, %s26
      %s30 = sphi 0, %s27
      %s46 = sphi 0, %s48
      %s49 = sphi 0, %s46
      %s50 = sphi 0, %s49
      %s66 = sphi 0, %s50
      %s74 = sphi 0, %s76
      %s77 = sphi 0, %s74
      %s78 = sphi 0, %s77
      %s94 = sphi 0, %s78
      %s104 = sphi 0, %s106
      %s107 = sphi 0, %s104
      %s108 = sphi 0, %s107
      %s124 = sphi 0, %s108
    $region4: #{tpu_custom_call.1} parent=1 // loop_header_branch
      %18 = sbr.rel (%p16) target = $region8
    $region5: #{tpu_custom_call.1} parent=1 // loop_body
      %s20 = ssub.s32 %s15, 1
      %s21 = ssub.s32 %s15, 2
      %s31 = sadd.s32 1, %s24
      %p32 = scmp.ge.s32.totalorder %s31, 1
      %s33 = scalar_select %p32, 0, %s31
      %s34 = sadd.s32 1, %s23
      %s35 = scalar_select %p32, %s34, %s23
      %p36 = scmp.ge.s32.totalorder %s35, 1
      %s37 = scalar_select %p36, 0, %s35
      %s38 = sadd.s32 1, %s22
      %s39 = scalar_select %p36, %s38, %s22
      %p40 = scmp.ge.s32.totalorder %s39, 2
      %s41 = scalar_select %p40, 0, %s39
      %s42 = ssub.s32 %s22, %s41
      %s43 = ssub.s32 %s24, %s33
      %s44 = sor.u32 %s42, %s43
      %p45 = scmp.eq.s32.totalorder %s44, 0
      %s47 = sadd.s32 %s46, 1
      %s48 = scalar_select %p45, %s46, %s47
      %p51 = pneg %p45
      %p52 = scmp.eq.s32.totalorder %s15, 1
      %p53 = por %p51, %p52
      %p54 = scmp.ne.s32.totalorder %s46, %s49
      %p55 = scmp.eq.s32.totalorder %s15, 0
      %p56 = por %p54, %p55
      %p57 = scmp.ne.s32.totalorder %s46, %s49
      %p58 = scmp.eq.s32.totalorder %s20, 1
      %p59 = por %p57, %p58
      %p60 = scmp.ne.s32.totalorder %s49, %s50
      %p61 = scmp.eq.s32.totalorder %s20, 0
      %p62 = por %p60, %p61
      %p63 = scmp.ne.s32.totalorder %s49, %s50
      %p64 = scmp.eq.s32.totalorder %s21, 1
      %p65 = por %p63, %p64
      %p67 = scmp.ne.s32.totalorder %s50, %s66
      %p68 = scmp.eq.s32.totalorder %s21, 0
      %p69 = por %p67, %p68
      %s70 = ssub.s32 %s22, %s41
      %s71 = ssub.s32 %s23, %s37
      %s72 = sor.u32 %s70, %s71
      %p73 = scmp.eq.s32.totalorder %s72, 0
      %s75 = sadd.s32 %s74, 1
      %s76 = scalar_select %p73, %s74, %s75
      %p79 = pneg %p73
      %p80 = scmp.eq.s32.totalorder %s15, 1
      %p81 = por %p79, %p80
      %p82 = scmp.ne.s32.totalorder %s74, %s77
      %p83 = scmp.eq.s32.totalorder %s15, 0
      %p84 = por %p82, %p83
      %p85 = scmp.ne.s32.totalorder %s74, %s77
      %p86 = scmp.eq.s32.totalorder %s20, 1
      %p87 = por %p85, %p86
      %p88 = scmp.ne.s32.totalorder %s77, %s78
      %p89 = scmp.eq.s32.totalorder %s20, 0
      %p90 = por %p88, %p89
      %p91 = scmp.ne.s32.totalorder %s77, %s78
      %p92 = scmp.eq.s32.totalorder %s21, 1
      %p93 = por %p91, %p92
      %p95 = scmp.ne.s32.totalorder %s78, %s94
      %p96 = scmp.eq.s32.totalorder %s21, 0
      %p97 = por %p95, %p96
      %s98 = ssub.s32 %s22, %s41
      %s99 = ssub.s32 %s24, %s33
      %s100 = sor.u32 %s98, %s99
      %s101 = ssub.s32 %s23, %s37
      %s102 = sor.u32 %s100, %s101
      %p103 = scmp.eq.s32.totalorder %s102, 0
      %s105 = sadd.s32 %s104, 1
      %s106 = scalar_select %p103, %s104, %s105
      %p109 = pneg %p103
      %p110 = scmp.eq.s32.totalorder %s15, 1
      %p111 = por %p109, %p110
      %p112 = scmp.ne.s32.totalorder %s104, %s107
      %p113 = scmp.eq.s32.totalorder %s15, 0
      %p114 = por %p112, %p113
      %p115 = scmp.ne.s32.totalorder %s104, %s107
      %p116 = scmp.eq.s32.totalorder %s20, 1
      %p117 = por %p115, %p116
      %p118 = scmp.ne.s32.totalorder %s107, %s108
      %p119 = scmp.eq.s32.totalorder %s20, 0
      %p120 = por %p118, %p119
      %p121 = scmp.ne.s32.totalorder %s107, %s108
      %p122 = scmp.eq.s32.totalorder %s21, 1
      %p123 = por %p121, %p122
      %p125 = scmp.ne.s32.totalorder %s108, %s124
      %p126 = scmp.eq.s32.totalorder %s21, 0
      %p127 = por %p125, %p126
      %p128 = scmp.le.s32.totalorder 1, %s15
      %p129 = scmp.lt.s32.totalorder %s15, 3
      %p130 = pnand %p128, %p129
      %p131 = pneg %p130
      // Predicated region
      $region9: #{tpu_custom_call.1} parent=5 // pred_check
        _
      $region10: #{tpu_custom_call.1} parent=5 // pred_check_branch
        %133 = sbr.rel (%p130) target = $region12
      $region11: #{tpu_custom_call.1} parent=5 // pred_region
        %s134 = ssub.s32 %s15, 1
        // Predicated region
        $region13: #{tpu_custom_call.1} parent=11 // pred_check
          %p135 = pneg %p90
        $region14: #{tpu_custom_call.1} parent=11 // pred_check_branch
          %137 = sbr.rel (%p135) target = $region16
        $region15: #{tpu_custom_call.1} parent=11 // pred_region
          %s139 = ssub.s32 512, 512
          %140 = vsyncadd [#allocation6], %s139
          %s141 = smul.addr %s25, 8
          %s142 = sadd.s32 %s26, %s141
          %s143 = smul.addr %s142, 64
          %s144 = scalar_lea.hbm %s1, %s143
          %s145 = sshll.u32 [#allocation5], 4
          %s146 = int_to_ptr.vmem [resolvable:$true] %s145
          %151 = dma.hbm_to_vmem [thread:$0]  %s144, 512, %s146, [#allocation6], 64, 64, 4
        $region16: #{tpu_custom_call.1} parent=11 // pred_fallthru
          _
      $region12: #{tpu_custom_call.1} parent=5 // pred_fallthru
        _
      %p152 = scmp.lt.s32.totalorder %s15, 2
      // Predicated region
      $region17: #{tpu_custom_call.1} parent=5 // pred_check
        %p153 = pneg %p152
      $region18: #{tpu_custom_call.1} parent=5 // pred_check_branch
        %155 = sbr.rel (%p153) target = $region20
      $region19: #{tpu_custom_call.1} parent=5 // pred_region
        // Predicated region
        $region21: #{tpu_custom_call.1} parent=19 // pred_check
          %p156 = pneg %p56
        $region22: #{tpu_custom_call.1} parent=19 // pred_check_branch
          %158 = sbr.rel (%p156) target = $region24
        $region23: #{tpu_custom_call.1} parent=19 // pred_region
          %s159 = sand.u32 %s46, 1
          %s160 = scalar_lea.sflag [#allocation3], %s159
          %s161 = sand.u32 %s46, 1
          %s162 = smul.addr %s161, 16
          %s163 = scalar_lea.vmem [#allocation2], %s162
          %s164 = smul.u32 2, %s24
          %s166 = ssub.s32 256, 256
          %167 = vsyncadd %s160, %s166
          %s168 = smul.addr %s22, 2
          %s169 = sadd.s32 %s164, %s168
          %s170 = smul.addr %s169, 128
          %s171 = scalar_lea.hbm %s0, %s170
          %s172 = sshll.u32 %s163, 4
          %s173 = int_to_ptr.vmem [resolvable:$true] %s172
          %178 = dma.hbm_to_vmem [thread:$0]  %s171, 256, %s173, %s160, 128, 128, 8
        $region24: #{tpu_custom_call.1} parent=19 // pred_fallthru
          _
      $region20: #{tpu_custom_call.1} parent=5 // pred_fallthru
        _
      %p179 = scmp.le.s32.totalorder 1, %s15
      %p180 = scmp.lt.s32.totalorder %s15, 3
      %p181 = pnand %p179, %p180
      %p182 = pneg %p181
      // Predicated region
      $region25: #{tpu_custom_call.1} parent=5 // pred_check
        _
      $region26: #{tpu_custom_call.1} parent=5 // pred_check_branch
        %184 = sbr.rel (%p181) target = $region28
      $region27: #{tpu_custom_call.1} parent=5 // pred_region
        %s185 = ssub.s32 %s15, 1
        %s186 = sand.u32 %s49, 1
        %s187 = scalar_lea.sflag [#allocation3], %s186
        %s188 = sand.u32 %s49, 1
        %s189 = smul.addr %s188, 16
        %s190 = scalar_lea.vmem [#allocation2], %s189
        // Predicated region
        $region29: #{tpu_custom_call.1} parent=27 // pred_check
          %p191 = pneg %p62
        $region30: #{tpu_custom_call.1} parent=27 // pred_check_branch
          %193 = sbr.rel (%p191) target = $region32
        $region31: #{tpu_custom_call.1} parent=27 // pred_region
          %194 = dma.done %s187, 256
        $region32: #{tpu_custom_call.1} parent=27 // pred_fallthru
          _
        // Predicated region
        $region33: #{tpu_custom_call.1} parent=27 // pred_check
          %p195 = pneg %p90
        $region34: #{tpu_custom_call.1} parent=27 // pred_check_branch
          %197 = sbr.rel (%p195) target = $region36
        $region35: #{tpu_custom_call.1} parent=27 // pred_region
          %198 = dma.done [#allocation6], 512
        $region36: #{tpu_custom_call.1} parent=27 // pred_fallthru
          _
        %s199 = sand.u32 %s49, 1
        %s200 = scalar_lea.sflag [#allocation3], %s199
        %s201 = sand.u32 %s49, 1
        %s202 = smul.addr %s201, 16
        %s203 = scalar_lea.vmem [#allocation2], %s202
        %p204 = pneg %p62
        %p205 = pneg %p59
        %p206 = pneg %p90
        %p207 = pneg %p87
        %p208 = pneg %p120
        %p209 = pneg %p117
        %s210 = sand.u32 %s107, 1
        %s211 = scalar_lea.sflag [#allocation4], %s210
        %s212 = sand.u32 %s107, 1
        %s213 = smul.addr %s212, 16
        %s214 = scalar_lea.vmem [#allocation7], %s213
        %s215 = smul.u32 2, %s27
        %s216 = smul.u32 2, %s27
        %v217 = vld [vmem:[%s190] sm:$0x1]
        %v218 = vld [vmem:[%s190 + $0x4] sm:$0x1]
        %v219 = vld [vmem:[#allocation5] sm:$0xf]
        %s220 = scalar_lea.vmem [#allocation5], 16
        %v221 = vld [vmem:[%s220] sm:$0xf]
        %v222 = vlaneseq
        %v223 = vshrl.u32 %v222, 7
        %v224 = vsub.s32 0, %v223
        %v225 = vrot.slane %v217, %v224
        %v226 = vmul.f32 %v219, %v225
        %v227 = vlaneseq
        %v228 = vshrl.u32 %v227, 7
        %v229 = vsub.s32 0, %v228
        %v230 = vrot.slane %v218, %v229
        %v231 = vmul.f32 %v221, %v230
        %v232 = vsub.f32 %v226, %v231
        %v233 = vadd.f32 %v232, 0.0
        %v234 = vmul.f32 %v219, %v230
        %v235 = vmul.f32 %v221, %v225
        %v236 = vadd.f32 %v234, %v235
        %v237 = vadd.f32 %v236, 0.0
        %v238 = vld [vmem:[%s190 + $0x1] sm:$0x1]
        %v239 = vld [vmem:[%s190 + $0x5] sm:$0x1]
        %s240 = scalar_lea.vmem [#allocation5], 4
        %v241 = vld [vmem:[%s240] sm:$0xf]
        %s242 = scalar_lea.vmem [#allocation5], 20
        %v243 = vld [vmem:[%s242] sm:$0xf]
        %v244 = vlaneseq
        %v245 = vshrl.u32 %v244, 7
        %v246 = vsub.s32 0, %v245
        %v247 = vrot.slane %v238, %v246
        %v248 = vmul.f32 %v241, %v247
        %v249 = vlaneseq
        %v250 = vshrl.u32 %v249, 7
        %v251 = vsub.s32 0, %v250
        %v252 = vrot.slane %v239, %v251
        %v253 = vmul.f32 %v243, %v252
        %v254 = vsub.f32 %v248, %v253
        %v255 = vadd.f32 %v233, %v254
        %v256 = vmul.f32 %v241, %v252
        %v257 = vmul.f32 %v243, %v247
        %v258 = vadd.f32 %v256, %v257
        %v259 = vadd.f32 %v237, %v258
        %v260 = vld [vmem:[%s190 + $0x2] sm:$0x1]
        %v261 = vld [vmem:[%s190 + $0x6] sm:$0x1]
        %s262 = scalar_lea.vmem [#allocation5], 8
        %v263 = vld [vmem:[%s262] sm:$0xf]
        %s264 = scalar_lea.vmem [#allocation5], 24
        %v265 = vld [vmem:[%s264] sm:$0xf]
        %v266 = vlaneseq
        %v267 = vshrl.u32 %v266, 7
        %v268 = vsub.s32 0, %v267
        %v269 = vrot.slane %v260, %v268
        %v270 = vmul.f32 %v263, %v269
        %v271 = vlaneseq
        %v272 = vshrl.u32 %v271, 7
        %v273 = vsub.s32 0, %v272
        %v274 = vrot.slane %v261, %v273
        %v275 = vmul.f32 %v265, %v274
        %v276 = vsub.f32 %v270, %v275
        %v277 = vadd.f32 %v255, %v276
        %v278 = vmul.f32 %v263, %v274
        %v279 = vmul.f32 %v265, %v269
        %v280 = vadd.f32 %v278, %v279
        %v281 = vadd.f32 %v259, %v280
        %v282 = vld [vmem:[%s190 + $0x3] sm:$0x1]
        %v283 = vld [vmem:[%s190 + $0x7] sm:$0x1]
        %s284 = scalar_lea.vmem [#allocation5], 12
        %v285 = vld [vmem:[%s284] sm:$0xf]
        %s286 = scalar_lea.vmem [#allocation5], 28
        %v287 = vld [vmem:[%s286] sm:$0xf]
        %v288 = vlaneseq
        %v289 = vshrl.u32 %v288, 7
        %v290 = vsub.s32 0, %v289
        %v291 = vrot.slane %v282, %v290
        %v292 = vmul.f32 %v285, %v291
        %v293 = vlaneseq
        %v294 = vshrl.u32 %v293, 7
        %v295 = vsub.s32 0, %v294
        %v296 = vrot.slane %v283, %v295
        %v297 = vmul.f32 %v287, %v296
        %v298 = vsub.f32 %v292, %v297
        %v299 = vadd.f32 %v277, %v298
        %v300 = vmul.f32 %v285, %v296
        %v301 = vmul.f32 %v287, %v291
        %v302 = vadd.f32 %v300, %v301
        %v303 = vadd.f32 %v281, %v302
        %304 = vst [vmem:[%s214] sm:$0xf] %v299
        %s305 = scalar_lea.vmem %s214, 8 [#allocation7]
        %306 = vst [vmem:[%s305] sm:$0xf] %v303
        %s307 = scalar_lea.vmem %s190, 8 [#allocation2]
        %v308 = vld [vmem:[%s307] sm:$0x1]
        %v309 = vld [vmem:[%s307 + $0x4] sm:$0x1]
        %v310 = vld [vmem:[#allocation5] sm:$0xf]
        %v311 = vld [vmem:[%s220] sm:$0xf]
        %v312 = vlaneseq
        %v313 = vshrl.u32 %v312, 7
        %v314 = vsub.s32 0, %v313
        %v315 = vrot.slane %v308, %v314
        %v316 = vmul.f32 %v310, %v315
        %v317 = vlaneseq
        %v318 = vshrl.u32 %v317, 7
        %v319 = vsub.s32 0, %v318
        %v320 = vrot.slane %v309, %v319
        %v321 = vmul.f32 %v311, %v320
        %v322 = vsub.f32 %v316, %v321
        %v323 = vadd.f32 %v322, 0.0
        %v324 = vmul.f32 %v310, %v320
        %v325 = vmul.f32 %v311, %v315
        %v326 = vadd.f32 %v324, %v325
        %v327 = vadd.f32 %v326, 0.0
        %v328 = vld [vmem:[%s307 + $0x1] sm:$0x1]
        %v329 = vld [vmem:[%s307 + $0x5] sm:$0x1]
        %v330 = vld [vmem:[%s240] sm:$0xf]
        %v331 = vld [vmem:[%s242] sm:$0xf]
        %v332 = vlaneseq
        %v333 = vshrl.u32 %v332, 7
        %v334 = vsub.s32 0, %v333
        %v335 = vrot.slane %v328, %v334
        %v336 = vmul.f32 %v330, %v335
        %v337 = vlaneseq
        %v338 = vshrl.u32 %v337, 7
        %v339 = vsub.s32 0, %v338
        %v340 = vrot.slane %v329, %v339
        %v341 = vmul.f32 %v331, %v340
        %v342 = vsub.f32 %v336, %v341
        %v343 = vadd.f32 %v323, %v342
        %v344 = vmul.f32 %v330, %v340
        %v345 = vmul.f32 %v331, %v335
        %v346 = vadd.f32 %v344, %v345
        %v347 = vadd.f32 %v327, %v346
        %v348 = vld [vmem:[%s307 + $0x2] sm:$0x1]
        %v349 = vld [vmem:[%s307 + $0x6] sm:$0x1]
        %v350 = vld [vmem:[%s262] sm:$0xf]
        %v351 = vld [vmem:[%s264] sm:$0xf]
        %v352 = vlaneseq
        %v353 = vshrl.u32 %v352, 7
        %v354 = vsub.s32 0, %v353
        %v355 = vrot.slane %v348, %v354
        %v356 = vmul.f32 %v350, %v355
        %v357 = vlaneseq
        %v358 = vshrl.u32 %v357, 7
        %v359 = vsub.s32 0, %v358
        %v360 = vrot.slane %v349, %v359
        %v361 = vmul.f32 %v351, %v360
        %v362 = vsub.f32 %v356, %v361
        %v363 = vadd.f32 %v343, %v362
        %v364 = vmul.f32 %v350, %v360
        %v365 = vmul.f32 %v351, %v355
        %v366 = vadd.f32 %v364, %v365
        %v367 = vadd.f32 %v347, %v366
        %v368 = vld [vmem:[%s307 + $0x3] sm:$0x1]
        %v369 = vld [vmem:[%s307 + $0x7] sm:$0x1]
        %v370 = vld [vmem:[%s284] sm:$0xf]
        %v371 = vld [vmem:[%s286] sm:$0xf]
        %v372 = vlaneseq
        %v373 = vshrl.u32 %v372, 7
        %v374 = vsub.s32 0, %v373
        %v375 = vrot.slane %v368, %v374
        %v376 = vmul.f32 %v370, %v375
        %v377 = vlaneseq
        %v378 = vshrl.u32 %v377, 7
        %v379 = vsub.s32 0, %v378
        %v380 = vrot.slane %v369, %v379
        %v381 = vmul.f32 %v371, %v380
        %v382 = vsub.f32 %v376, %v381
        %v383 = vadd.f32 %v363, %v382
        %v384 = vmul.f32 %v370, %v380
        %v385 = vmul.f32 %v371, %v375
        %v386 = vadd.f32 %v384, %v385
        %v387 = vadd.f32 %v367, %v386
        %s388 = scalar_lea.vmem %s214, 4 [#allocation7]
        %389 = vst [vmem:[%s388] sm:$0xf] %v383
        %s390 = scalar_lea.vmem %s214, 12 [#allocation7]
        %391 = vst [vmem:[%s390] sm:$0xf] %v387
        %s392 = sand.u32 %s107, 1
        %s393 = scalar_lea.sflag [#allocation4], %s392
        %s394 = sand.u32 %s107, 1
        %s395 = smul.addr %s394, 16
        %s396 = scalar_lea.vmem [#allocation7], %s395
        // Predicated region
        $region37: #{tpu_custom_call.1} parent=27 // pred_check
          %p397 = pneg %p117
        $region38: #{tpu_custom_call.1} parent=27 // pred_check_branch
          %399 = sbr.rel (%p397) target = $region40
        $region39: #{tpu_custom_call.1} parent=27 // pred_region
          %s400 = smul.u32 2, %s27
          %s402 = ssub.s32 256, 256
          %403 = vsyncadd %s393, %s402
          %s404 = sadd.s32 %s26, %s400
          %s405 = smul.addr %s25, 4
          %s406 = sadd.s32 %s404, %s405
          %s407 = smul.addr %s406, 64
          %s408 = scalar_lea.hbm %s2, %s407
          %s409 = sshll.u32 %s396, 4
          %s410 = int_to_ptr.vmem [resolvable:$true] %s409
          %415 = dma.vmem_to_hbm [thread:$0]  %s410, 256, %s408, %s393, 64, 64, 4
        $region40: #{tpu_custom_call.1} parent=27 // pred_fallthru
          _
      $region28: #{tpu_custom_call.1} parent=5 // pred_fallthru
        _
      %p416 = scmp.le.s32.totalorder 2, %s15
      // Predicated region
      $region41: #{tpu_custom_call.1} parent=5 // pred_check
        %p417 = pneg %p416
      $region42: #{tpu_custom_call.1} parent=5 // pred_check_branch
        %419 = sbr.rel (%p417) target = $region44
      $region43: #{tpu_custom_call.1} parent=5 // pred_region
        %s420 = ssub.s32 %s15, 2
        // Predicated region
        $region45: #{tpu_custom_call.1} parent=43 // pred_check
          %p421 = pneg %p123
        $region46: #{tpu_custom_call.1} parent=43 // pred_check_branch
          %423 = sbr.rel (%p421) target = $region48
        $region47: #{tpu_custom_call.1} parent=43 // pred_region
          %s424 = sand.u32 %s108, 1
          %s425 = scalar_lea.sflag [#allocation4], %s424
          %s426 = sand.u32 %s108, 1
          %s427 = smul.addr %s426, 16
          %s428 = scalar_lea.vmem [#allocation7], %s427
          %429 = dma.done %s425, 256
        $region48: #{tpu_custom_call.1} parent=43 // pred_fallthru
          _
      $region44: #{tpu_custom_call.1} parent=5 // pred_fallthru
        _
    $region6: #{tpu_custom_call.1} parent=1 // loop_footer
      %s19 = sadd.s32 1, %s15
    $region7: #{tpu_custom_call.1} parent=1 // loop_footer_branch
      %14 = sbr.rel target = $region3
    $region8: #{tpu_custom_call.1} parent=1 // loop_exit
      _
    %430 = vsyncpa [#allocation3], 1
    %s431 = scalar_lea.sflag [#allocation3], 1
    %432 = vsyncpa %s431, 1
    %433 = vsyncpa [#allocation6], 1
    %434 = vsyncpa [#allocation4], 1
    %s435 = scalar_lea.sflag [#allocation4], 1
    %436 = vsyncpa %s435, 1

// kernel: tpu_custom_call.1
$region0: #{tpu_custom_call.1}
  #allocation0 [shape = 'u32[]', space=smem, size = 0x4, offset = 0x4, fixed_abs, tag = 'smem constant byte address 0x4 - core index']
  #allocation1 [shape = 'u32[144,128]{1,0:T(1,128)}', space=vmem, size = 0x12000, scoped, tag = 'internal scratch']
  %s0 = inlined_call_operand.hbm [shape: f32[2,2,8,128], index: 0, kind: input, shape index: {}]
  %s1 = inlined_call_operand.hbm [shape: f32[2,8,4,128], index: 1, kind: input, shape index: {}]
  %s2 = inlined_call_operand.hbm [shape: f32[2,2,2,4,128], index: 2, kind: output, shape index: {}]
  %s3 = sld [smem:[#allocation0]]
  $region49: #{tpu_custom_call.1} parent=0
    _
  %s5 = ssub.s32 1, %s3
  %s6 = scalar_select 0, %s5, %s3
  $region1: #{tpu_custom_call.1} parent=0
    #allocation2 [shape = 'u8[16384]{0}', space=vmem, size = 0x4000, scoped, tag = 'input window, operand 0']
    #allocation3 [shape = 's32[2]{0}', space=sflag, size = 0x8, scoped, tag = 'scoped memory for tpu_custom_call.1']
    #allocation4 [shape = 's32[2]{0}', space=sflag, size = 0x8, scoped, tag = 'scoped memory for tpu_custom_call.1']
    #allocation5 [shape = 'u8[32768]{0}', space=vmem, size = 0x8000, scoped, tag = 'input window, operand 1']
    #allocation6 [shape = 's32[2]{0}', space=sflag, size = 0x8, scoped, tag = 'scoped memory for tpu_custom_call.1']
    #allocation7 [shape = 'u8[16384]{0}', space=vmem, size = 0x4000, scoped, tag = 'output window, operand 0']
    %7 = vsyncpa [#allocation3], 0
    %s8 = scalar_lea.sflag [#allocation3], 1
    %9 = vsyncpa %s8, 0
    %10 = vsyncpa [#allocation6], 0
    %s11 = scalar_lea.sflag [#allocation6], 1
    %12 = vsyncpa %s11, 0
    %13 = vsyncpa [#allocation4], 0
    %s14 = scalar_lea.sflag [#allocation4], 1
    %15 = vsyncpa %s14, 0
    loop: start=0, step=1, limit=4
    $region2: #{tpu_custom_call.1} parent=1 // loop_pre_header
      _
    $region3: #{tpu_custom_call.1} parent=1 // loop_header
      %s17 = sphi 0, %s21
      %p18 = scmp.ge.s32.totalorder %s17, 4
      %s24 = sphi 0, %s43
      %s25 = sphi 0, %s39
      %s26 = sphi 0, %s35
      %s27 = sphi 0, %s24
      %s28 = sphi 0, %s25
      %s29 = sphi 0, %s26
      %s30 = sphi 0, %s27
      %s31 = sphi 0, %s28
      %s32 = sphi 0, %s29
      %s48 = sphi 0, %s50
      %s51 = sphi 0, %s48
      %s52 = sphi 0, %s51
      %s68 = sphi 0, %s52
      %s76 = sphi 0, %s78
      %s79 = sphi 0, %s76
      %s80 = sphi 0, %s79
      %s96 = sphi 0, %s80
      %s106 = sphi 0, %s108
      %s109 = sphi 0, %s106
      %s110 = sphi 0, %s109
      %s126 = sphi 0, %s110
    $region4: #{tpu_custom_call.1} parent=1 // loop_header_branch
      %20 = sbr.rel (%p18) target = $region8
    $region5: #{tpu_custom_call.1} parent=1 // loop_body
      %s22 = ssub.s32 %s17, 1
      %s23 = ssub.s32 %s17, 2
      %s33 = sadd.s32 1, %s26
      %p34 = scmp.ge.s32.totalorder %s33, 1
      %s35 = scalar_select %p34, 0, %s33
      %s36 = sadd.s32 1, %s25
      %s37 = scalar_select %p34, %s36, %s25
      %p38 = scmp.ge.s32.totalorder %s37, 1
      %s39 = scalar_select %p38, 0, %s37
      %s40 = sadd.s32 1, %s24
      %s41 = scalar_select %p38, %s40, %s24
      %p42 = scmp.ge.s32.totalorder %s41, 2
      %s43 = scalar_select %p42, 0, %s41
      %s44 = ssub.s32 %s24, %s43
      %s45 = ssub.s32 %s26, %s35
      %s46 = sor.u32 %s44, %s45
      %p47 = scmp.eq.s32.totalorder %s46, 0
      %s49 = sadd.s32 %s48, 1
      %s50 = scalar_select %p47, %s48, %s49
      %p53 = pneg %p47
      %p54 = scmp.eq.s32.totalorder %s17, 1
      %p55 = por %p53, %p54
      %p56 = scmp.ne.s32.totalorder %s48, %s51
      %p57 = scmp.eq.s32.totalorder %s17, 0
      %p58 = por %p56, %p57
      %p59 = scmp.ne.s32.totalorder %s48, %s51
      %p60 = scmp.eq.s32.totalorder %s22, 1
      %p61 = por %p59, %p60
      %p62 = scmp.ne.s32.totalorder %s51, %s52
      %p63 = scmp.eq.s32.totalorder %s22, 0
      %p64 = por %p62, %p63
      %p65 = scmp.ne.s32.totalorder %s51, %s52
      %p66 = scmp.eq.s32.totalorder %s23, 1
      %p67 = por %p65, %p66
      %p69 = scmp.ne.s32.totalorder %s52, %s68
      %p70 = scmp.eq.s32.totalorder %s23, 0
      %p71 = por %p69, %p70
      %s72 = ssub.s32 %s24, %s43
      %s73 = ssub.s32 %s25, %s39
      %s74 = sor.u32 %s72, %s73
      %p75 = scmp.eq.s32.totalorder %s74, 0
      %s77 = sadd.s32 %s76, 1
      %s78 = scalar_select %p75, %s76, %s77
      %p81 = pneg %p75
      %p82 = scmp.eq.s32.totalorder %s17, 1
      %p83 = por %p81, %p82
      %p84 = scmp.ne.s32.totalorder %s76, %s79
      %p85 = scmp.eq.s32.totalorder %s17, 0
      %p86 = por %p84, %p85
      %p87 = scmp.ne.s32.totalorder %s76, %s79
      %p88 = scmp.eq.s32.totalorder %s22, 1
      %p89 = por %p87, %p88
      %p90 = scmp.ne.s32.totalorder %s79, %s80
      %p91 = scmp.eq.s32.totalorder %s22, 0
      %p92 = por %p90, %p91
      %p93 = scmp.ne.s32.totalorder %s79, %s80
      %p94 = scmp.eq.s32.totalorder %s23, 1
      %p95 = por %p93, %p94
      %p97 = scmp.ne.s32.totalorder %s80, %s96
      %p98 = scmp.eq.s32.totalorder %s23, 0
      %p99 = por %p97, %p98
      %s100 = ssub.s32 %s24, %s43
      %s101 = ssub.s32 %s26, %s35
      %s102 = sor.u32 %s100, %s101
      %s103 = ssub.s32 %s25, %s39
      %s104 = sor.u32 %s102, %s103
      %p105 = scmp.eq.s32.totalorder %s104, 0
      %s107 = sadd.s32 %s106, 1
      %s108 = scalar_select %p105, %s106, %s107
      %p111 = pneg %p105
      %p112 = scmp.eq.s32.totalorder %s17, 1
      %p113 = por %p111, %p112
      %p114 = scmp.ne.s32.totalorder %s106, %s109
      %p115 = scmp.eq.s32.totalorder %s17, 0
      %p116 = por %p114, %p115
      %p117 = scmp.ne.s32.totalorder %s106, %s109
      %p118 = scmp.eq.s32.totalorder %s22, 1
      %p119 = por %p117, %p118
      %p120 = scmp.ne.s32.totalorder %s109, %s110
      %p121 = scmp.eq.s32.totalorder %s22, 0
      %p122 = por %p120, %p121
      %p123 = scmp.ne.s32.totalorder %s109, %s110
      %p124 = scmp.eq.s32.totalorder %s23, 1
      %p125 = por %p123, %p124
      %p127 = scmp.ne.s32.totalorder %s110, %s126
      %p128 = scmp.eq.s32.totalorder %s23, 0
      %p129 = por %p127, %p128
      %p130 = scmp.le.s32.totalorder 1, %s17
      %p131 = scmp.lt.s32.totalorder %s17, 3
      %p132 = pnand %p130, %p131
      %p133 = pneg %p132
      // Predicated region
      $region9: #{tpu_custom_call.1} parent=5 // pred_check
        _
      $region10: #{tpu_custom_call.1} parent=5 // pred_check_branch
        %135 = sbr.rel (%p132) target = $region12
      $region11: #{tpu_custom_call.1} parent=5 // pred_region
        %s136 = ssub.s32 %s17, 1
      $region12: #{tpu_custom_call.1} parent=5 // pred_fallthru
        _
      %p137 = scmp.lt.s32.totalorder %s17, 2
      // Predicated region
      $region13: #{tpu_custom_call.1} parent=5 // pred_check
        %p138 = pneg %p137
      $region14: #{tpu_custom_call.1} parent=5 // pred_check_branch
        %140 = sbr.rel (%p138) target = $region16
      $region15: #{tpu_custom_call.1} parent=5 // pred_region
        // Predicated region
        $region17: #{tpu_custom_call.1} parent=15 // pred_check
          %p141 = pneg %p58
        $region18: #{tpu_custom_call.1} parent=15 // pred_check_branch
          %143 = sbr.rel (%p141) target = $region20
        $region19: #{tpu_custom_call.1} parent=15 // pred_region
          %s144 = sand.u32 %s48, 1
          %s145 = scalar_lea.sflag [#allocation3], %s144
          %s146 = sand.u32 %s48, 1
          %s147 = smul.addr %s146, 16
          %s148 = scalar_lea.vmem [#allocation2], %s147
          %s149 = smul.u32 2, %s26
          %s151 = ssub.s32 256, 256
          %152 = vsyncadd %s145, %s151
          %s153 = smul.addr %s24, 2
          %s154 = sadd.s32 %s149, %s153
          %s155 = smul.addr %s154, 128
          %s156 = scalar_lea.hbm %s0, %s155
          %s157 = sshll.u32 %s148, 4
          %s158 = int_to_ptr.vmem [resolvable:$true] %s157
          %163 = dma.hbm_to_vmem [thread:$0]  %s156, 256, %s158, %s145, 128, 128, 8
        $region20: #{tpu_custom_call.1} parent=15 // pred_fallthru
          _
        // Predicated region
        $region21: #{tpu_custom_call.1} parent=15 // pred_check
          %p164 = pneg %p86
        $region22: #{tpu_custom_call.1} parent=15 // pred_check_branch
          %166 = sbr.rel (%p164) target = $region24
        $region23: #{tpu_custom_call.1} parent=15 // pred_region
          %s167 = sand.u32 %s76, 1
          %s168 = scalar_lea.sflag [#allocation6], %s167
          %s169 = sand.u32 %s76, 1
          %s170 = smul.addr %s169, 32
          %s171 = scalar_lea.vmem [#allocation5], %s170
          %s173 = ssub.s32 512, 512
          %174 = vsyncadd %s168, %s173
          %s175 = smul.addr %s24, 8
          %s176 = sadd.s32 %s25, %s175
          %s177 = smul.addr %s176, 64
          %s178 = scalar_lea.hbm %s1, %s177
          %s179 = sshll.u32 %s171, 4
          %s180 = int_to_ptr.vmem [resolvable:$true] %s179
          %185 = dma.hbm_to_vmem [thread:$0]  %s178, 512, %s180, %s168, 64, 64, 4
        $region24: #{tpu_custom_call.1} parent=15 // pred_fallthru
          _
      $region16: #{tpu_custom_call.1} parent=5 // pred_fallthru
        _
      %p186 = scmp.le.s32.totalorder 1, %s17
      %p187 = scmp.lt.s32.totalorder %s17, 3
      %p188 = pnand %p186, %p187
      %p189 = pneg %p188
      // Predicated region
      $region25: #{tpu_custom_call.1} parent=5 // pred_check
        _
      $region26: #{tpu_custom_call.1} parent=5 // pred_check_branch
        %191 = sbr.rel (%p188) target = $region28
      $region27: #{tpu_custom_call.1} parent=5 // pred_region
        %s192 = ssub.s32 %s17, 1
        %s193 = sand.u32 %s51, 1
        %s194 = scalar_lea.sflag [#allocation3], %s193
        %s195 = sand.u32 %s51, 1
        %s196 = smul.addr %s195, 16
        %s197 = scalar_lea.vmem [#allocation2], %s196
        // Predicated region
        $region29: #{tpu_custom_call.1} parent=27 // pred_check
          %p198 = pneg %p64
        $region30: #{tpu_custom_call.1} parent=27 // pred_check_branch
          %200 = sbr.rel (%p198) target = $region32
        $region31: #{tpu_custom_call.1} parent=27 // pred_region
          %201 = dma.done %s194, 256
        $region32: #{tpu_custom_call.1} parent=27 // pred_fallthru
          _
        %s202 = sand.u32 %s79, 1
        %s203 = scalar_lea.sflag [#allocation6], %s202
        %s204 = sand.u32 %s79, 1
        %s205 = smul.addr %s204, 32
        %s206 = scalar_lea.vmem [#allocation5], %s205
        // Predicated region
        $region33: #{tpu_custom_call.1} parent=27 // pred_check
          %p207 = pneg %p92
        $region34: #{tpu_custom_call.1} parent=27 // pred_check_branch
          %209 = sbr.rel (%p207) target = $region36
        $region35: #{tpu_custom_call.1} parent=27 // pred_region
          %210 = dma.done %s203, 512
        $region36: #{tpu_custom_call.1} parent=27 // pred_fallthru
          _
        %s211 = sand.u32 %s51, 1
        %s212 = scalar_lea.sflag [#allocation3], %s211
        %s213 = sand.u32 %s51, 1
        %s214 = smul.addr %s213, 16
        %s215 = scalar_lea.vmem [#allocation2], %s214
        %p216 = pneg %p64
        %p217 = pneg %p61
        %s218 = sand.u32 %s79, 1
        %s219 = scalar_lea.sflag [#allocation6], %s218
        %s220 = sand.u32 %s79, 1
        %s221 = smul.addr %s220, 32
        %s222 = scalar_lea.vmem [#allocation5], %s221
        %p223 = pneg %p92
        %p224 = pneg %p89
        %p225 = pneg %p122
        %p226 = pneg %p119
        %s227 = sand.u32 %s109, 1
        %s228 = scalar_lea.sflag [#allocation4], %s227
        %s229 = sand.u32 %s109, 1
        %s230 = smul.addr %s229, 16
        %s231 = scalar_lea.vmem [#allocation7], %s230
        %s232 = smul.u32 2, %s29
        %s233 = smul.u32 2, %s29
        %v234 = vld [vmem:[%s197] sm:$0x1]
        %v235 = vld [vmem:[%s197 + $0x4] sm:$0x1]
        %v236 = vld [vmem:[%s206] sm:$0xf]
        %s237 = scalar_lea.vmem %s206, 16 [#allocation5]
        %v238 = vld [vmem:[%s237] sm:$0xf]
        %v239 = vlaneseq
        %v240 = vshrl.u32 %v239, 7
        %v241 = vsub.s32 0, %v240
        %v242 = vrot.slane %v234, %v241
        %v243 = vmul.f32 %v236, %v242
        %v244 = vlaneseq
        %v245 = vshrl.u32 %v244, 7
        %v246 = vsub.s32 0, %v245
        %v247 = vrot.slane %v235, %v246
        %v248 = vmul.f32 %v238, %v247
        %v249 = vsub.f32 %v243, %v248
        %v250 = vadd.f32 %v249, 0.0
        %v251 = vmul.f32 %v236, %v247
        %v252 = vmul.f32 %v238, %v242
        %v253 = vadd.f32 %v251, %v252
        %v254 = vadd.f32 %v253, 0.0
        %v255 = vld [vmem:[%s197 + $0x1] sm:$0x1]
        %v256 = vld [vmem:[%s197 + $0x5] sm:$0x1]
        %s257 = scalar_lea.vmem %s206, 4 [#allocation5]
        %v258 = vld [vmem:[%s257] sm:$0xf]
        %s259 = scalar_lea.vmem %s206, 20 [#allocation5]
        %v260 = vld [vmem:[%s259] sm:$0xf]
        %v261 = vlaneseq
        %v262 = vshrl.u32 %v261, 7
        %v263 = vsub.s32 0, %v262
        %v264 = vrot.slane %v255, %v263
        %v265 = vmul.f32 %v258, %v264
        %v266 = vlaneseq
        %v267 = vshrl.u32 %v266, 7
        %v268 = vsub.s32 0, %v267
        %v269 = vrot.slane %v256, %v268
        %v270 = vmul.f32 %v260, %v269
        %v271 = vsub.f32 %v265, %v270
        %v272 = vadd.f32 %v250, %v271
        %v273 = vmul.f32 %v258, %v269
        %v274 = vmul.f32 %v260, %v264
        %v275 = vadd.f32 %v273, %v274
        %v276 = vadd.f32 %v254, %v275
        %v277 = vld [vmem:[%s197 + $0x2] sm:$0x1]
        %v278 = vld [vmem:[%s197 + $0x6] sm:$0x1]
        %s279 = scalar_lea.vmem %s206, 8 [#allocation5]
        %v280 = vld [vmem:[%s279] sm:$0xf]
        %s281 = scalar_lea.vmem %s206, 24 [#allocation5]
        %v282 = vld [vmem:[%s281] sm:$0xf]
        %v283 = vlaneseq
        %v284 = vshrl.u32 %v283, 7
        %v285 = vsub.s32 0, %v284
        %v286 = vrot.slane %v277, %v285
        %v287 = vmul.f32 %v280, %v286
        %v288 = vlaneseq
        %v289 = vshrl.u32 %v288, 7
        %v290 = vsub.s32 0, %v289
        %v291 = vrot.slane %v278, %v290
        %v292 = vmul.f32 %v282, %v291
        %v293 = vsub.f32 %v287, %v292
        %v294 = vadd.f32 %v272, %v293
        %v295 = vmul.f32 %v280, %v291
        %v296 = vmul.f32 %v282, %v286
        %v297 = vadd.f32 %v295, %v296
        %v298 = vadd.f32 %v276, %v297
        %v299 = vld [vmem:[%s197 + $0x3] sm:$0x1]
        %v300 = vld [vmem:[%s197 + $0x7] sm:$0x1]
        %s301 = scalar_lea.vmem %s206, 12 [#allocation5]
        %v302 = vld [vmem:[%s301] sm:$0xf]
        %s303 = scalar_lea.vmem %s206, 28 [#allocation5]
        %v304 = vld [vmem:[%s303] sm:$0xf]
        %v305 = vlaneseq
        %v306 = vshrl.u32 %v305, 7
        %v307 = vsub.s32 0, %v306
        %v308 = vrot.slane %v299, %v307
        %v309 = vmul.f32 %v302, %v308
        %v310 = vlaneseq
        %v311 = vshrl.u32 %v310, 7
        %v312 = vsub.s32 0, %v311
        %v313 = vrot.slane %v300, %v312
        %v314 = vmul.f32 %v304, %v313
        %v315 = vsub.f32 %v309, %v314
        %v316 = vadd.f32 %v294, %v315
        %v317 = vmul.f32 %v302, %v313
        %v318 = vmul.f32 %v304, %v308
        %v319 = vadd.f32 %v317, %v318
        %v320 = vadd.f32 %v298, %v319
        %321 = vst [vmem:[%s231] sm:$0xf] %v316
        %s322 = scalar_lea.vmem %s231, 8 [#allocation7]
        %323 = vst [vmem:[%s322] sm:$0xf] %v320
        %s324 = scalar_lea.vmem %s197, 8 [#allocation2]
        %v325 = vld [vmem:[%s324] sm:$0x1]
        %v326 = vld [vmem:[%s324 + $0x4] sm:$0x1]
        %v327 = vld [vmem:[%s206] sm:$0xf]
        %v328 = vld [vmem:[%s237] sm:$0xf]
        %v329 = vlaneseq
        %v330 = vshrl.u32 %v329, 7
        %v331 = vsub.s32 0, %v330
        %v332 = vrot.slane %v325, %v331
        %v333 = vmul.f32 %v327, %v332
        %v334 = vlaneseq
        %v335 = vshrl.u32 %v334, 7
        %v336 = vsub.s32 0, %v335
        %v337 = vrot.slane %v326, %v336
        %v338 = vmul.f32 %v328, %v337
        %v339 = vsub.f32 %v333, %v338
        %v340 = vadd.f32 %v339, 0.0
        %v341 = vmul.f32 %v327, %v337
        %v342 = vmul.f32 %v328, %v332
        %v343 = vadd.f32 %v341, %v342
        %v344 = vadd.f32 %v343, 0.0
        %v345 = vld [vmem:[%s324 + $0x1] sm:$0x1]
        %v346 = vld [vmem:[%s324 + $0x5] sm:$0x1]
        %v347 = vld [vmem:[%s257] sm:$0xf]
        %v348 = vld [vmem:[%s259] sm:$0xf]
        %v349 = vlaneseq
        %v350 = vshrl.u32 %v349, 7
        %v351 = vsub.s32 0, %v350
        %v352 = vrot.slane %v345, %v351
        %v353 = vmul.f32 %v347, %v352
        %v354 = vlaneseq
        %v355 = vshrl.u32 %v354, 7
        %v356 = vsub.s32 0, %v355
        %v357 = vrot.slane %v346, %v356
        %v358 = vmul.f32 %v348, %v357
        %v359 = vsub.f32 %v353, %v358
        %v360 = vadd.f32 %v340, %v359
        %v361 = vmul.f32 %v347, %v357
        %v362 = vmul.f32 %v348, %v352
        %v363 = vadd.f32 %v361, %v362
        %v364 = vadd.f32 %v344, %v363
        %v365 = vld [vmem:[%s324 + $0x2] sm:$0x1]
        %v366 = vld [vmem:[%s324 + $0x6] sm:$0x1]
        %v367 = vld [vmem:[%s279] sm:$0xf]
        %v368 = vld [vmem:[%s281] sm:$0xf]
        %v369 = vlaneseq
        %v370 = vshrl.u32 %v369, 7
        %v371 = vsub.s32 0, %v370
        %v372 = vrot.slane %v365, %v371
        %v373 = vmul.f32 %v367, %v372
        %v374 = vlaneseq
        %v375 = vshrl.u32 %v374, 7
        %v376 = vsub.s32 0, %v375
        %v377 = vrot.slane %v366, %v376
        %v378 = vmul.f32 %v368, %v377
        %v379 = vsub.f32 %v373, %v378
        %v380 = vadd.f32 %v360, %v379
        %v381 = vmul.f32 %v367, %v377
        %v382 = vmul.f32 %v368, %v372
        %v383 = vadd.f32 %v381, %v382
        %v384 = vadd.f32 %v364, %v383
        %v385 = vld [vmem:[%s324 + $0x3] sm:$0x1]
        %v386 = vld [vmem:[%s324 + $0x7] sm:$0x1]
        %v387 = vld [vmem:[%s301] sm:$0xf]
        %v388 = vld [vmem:[%s303] sm:$0xf]
        %v389 = vlaneseq
        %v390 = vshrl.u32 %v389, 7
        %v391 = vsub.s32 0, %v390
        %v392 = vrot.slane %v385, %v391
        %v393 = vmul.f32 %v387, %v392
        %v394 = vlaneseq
        %v395 = vshrl.u32 %v394, 7
        %v396 = vsub.s32 0, %v395
        %v397 = vrot.slane %v386, %v396
        %v398 = vmul.f32 %v388, %v397
        %v399 = vsub.f32 %v393, %v398
        %v400 = vadd.f32 %v380, %v399
        %v401 = vmul.f32 %v387, %v397
        %v402 = vmul.f32 %v388, %v392
        %v403 = vadd.f32 %v401, %v402
        %v404 = vadd.f32 %v384, %v403
        %s405 = scalar_lea.vmem %s231, 4 [#allocation7]
        %406 = vst [vmem:[%s405] sm:$0xf] %v400
        %s407 = scalar_lea.vmem %s231, 12 [#allocation7]
        %408 = vst [vmem:[%s407] sm:$0xf] %v404
        %s409 = sand.u32 %s109, 1
        %s410 = scalar_lea.sflag [#allocation4], %s409
        %s411 = sand.u32 %s109, 1
        %s412 = smul.addr %s411, 16
        %s413 = scalar_lea.vmem [#allocation7], %s412
        // Predicated region
        $region37: #{tpu_custom_call.1} parent=27 // pred_check
          %p414 = pneg %p119
        $region38: #{tpu_custom_call.1} parent=27 // pred_check_branch
          %416 = sbr.rel (%p414) target = $region40
        $region39: #{tpu_custom_call.1} parent=27 // pred_region
          %s417 = smul.u32 2, %s29
          %s419 = ssub.s32 256, 256
          %420 = vsyncadd %s410, %s419
          %s421 = sadd.s32 %s28, %s417
          %s422 = smul.addr %s27, 4
          %s423 = sadd.s32 %s421, %s422
          %s424 = smul.addr %s423, 64
          %s425 = scalar_lea.hbm %s2, %s424
          %s426 = sshll.u32 %s413, 4
          %s427 = int_to_ptr.vmem [resolvable:$true] %s426
          %432 = dma.vmem_to_hbm [thread:$0]  %s427, 256, %s425, %s410, 64, 64, 4
        $region40: #{tpu_custom_call.1} parent=27 // pred_fallthru
          _
      $region28: #{tpu_custom_call.1} parent=5 // pred_fallthru
        _
      %p433 = scmp.le.s32.totalorder 2, %s17
      // Predicated region
      $region41: #{tpu_custom_call.1} parent=5 // pred_check
        %p434 = pneg %p433
      $region42: #{tpu_custom_call.1} parent=5 // pred_check_branch
        %436 = sbr.rel (%p434) target = $region44
      $region43: #{tpu_custom_call.1} parent=5 // pred_region
        %s437 = ssub.s32 %s17, 2
        // Predicated region
        $region45: #{tpu_custom_call.1} parent=43 // pred_check
          %p438 = pneg %p125
        $region46: #{tpu_custom_call.1} parent=43 // pred_check_branch
          %440 = sbr.rel (%p438) target = $region48
        $region47: #{tpu_custom_call.1} parent=43 // pred_region
          %s441 = sand.u32 %s110, 1
          %s442 = scalar_lea.sflag [#allocation4], %s441
          %s443 = sand.u32 %s110, 1
          %s444 = smul.addr %s443, 16
          %s445 = scalar_lea.vmem [#allocation7], %s444
          %446 = dma.done %s442, 256
        $region48: #{tpu_custom_call.1} parent=43 // pred_fallthru
          _
      $region44: #{tpu_custom_call.1} parent=5 // pred_fallthru
        _
    $region6: #{tpu_custom_call.1} parent=1 // loop_footer
      %s21 = sadd.s32 1, %s17
    $region7: #{tpu_custom_call.1} parent=1 // loop_footer_branch
      %16 = sbr.rel target = $region3
    $region8: #{tpu_custom_call.1} parent=1 // loop_exit
      _
    %447 = vsyncpa [#allocation3], 1
    %s448 = scalar_lea.sflag [#allocation3], 1
    %449 = vsyncpa %s448, 1
    %450 = vsyncpa [#allocation6], 1
    %s451 = scalar_lea.sflag [#allocation6], 1
    %452 = vsyncpa %s451, 1
    %453 = vsyncpa [#allocation4], 1
    %s454 = scalar_lea.sflag [#allocation4], 1
    %455 = vsyncpa %s454, 1

</llo_original>
